<compile_context>
chip_gen: v7x
topology: tpu7x:2x2x1
jax: 0.10.0
libtpu: 0.0.40
codegen_flags: <defaults>
</compile_context>

<pallas_src>
import functools

import jax
import jax.numpy as jnp
from jax import lax
from jax.experimental import pallas as pl
from jax.experimental.pallas import tpu as pltpu


# ----------------------------------------------------------------------------
# Tiling / compiler helpers
# ----------------------------------------------------------------------------
def _round_up(x, m):
    return ((x + m - 1) // m) * m


def _fit_tile(dim, target, align):
    """Largest multiple of `align` <= target that divides `dim`, else full dim."""
    if dim <= target:
        return dim
    t = (target // align) * align
    while t >= align:
        if dim % t == 0:
            return t
        t -= align
    return dim


def _row_tile(M, target):
    """Row (sublane) tile aligned to 16 (bf16 packing) plus padded row count."""
    target = max(16, (target // 16) * 16)
    tm = target if M >= target else _round_up(M, 16)
    return tm, _round_up(M, tm)


def _pad_rows(a, m_pad):
    M = a.shape[0]
    if m_pad == M:
        return a
    return jnp.pad(a, ((0, m_pad - M), (0, 0)))


@functools.lru_cache(maxsize=None)
def _vmem_limit_bytes():
    # ~75% of physical VMEM: ~48 MiB on v7x (64 MiB), ~96 MiB on v5e/v6e (128 MiB).
    default = 48 * 1024 * 1024
    try:
        info = pltpu.get_tpu_info()
        cap = getattr(info, "vmem_capacity_bytes", None)
        if cap:
            return int(cap * 3 // 4)
    except Exception:
        pass
    return default


def _compiler_params(dimension_semantics):
    return pltpu.CompilerParams(
        dimension_semantics=dimension_semantics,
        vmem_limit_bytes=_vmem_limit_bytes(),
    )


# ----------------------------------------------------------------------------
# Tiled matmul + bias (fused QKV projection)
# ----------------------------------------------------------------------------
def _matmul_kernel(x_ref, w_ref, b_ref, o_ref, acc_ref):
    k = pl.program_id(2)

    @pl.when(k == 0)
    def _():
        acc_ref[...] = jnp.zeros_like(acc_ref)

    acc_ref[...] += jnp.dot(x_ref[...], w_ref[...],
                            preferred_element_type=jnp.float32)

    @pl.when(k == pl.num_programs(2) - 1)
    def _():
        o_ref[...] = (acc_ref[...] + b_ref[...].astype(jnp.float32)
                      ).astype(o_ref.dtype)


def matmul_bias(x, w, b, tm=512, tn=512, tk=512):
    """x: (M, K), w: (K, N), b: (N,) -> (M, N).  Tiled, K-axis accumulated."""
    M, K = x.shape
    _, N = w.shape
    tm, m_pad = _row_tile(M, tm)
    tk = _fit_tile(K, tk, 128)
    tn = _fit_tile(N, tn, 128)
    x_p = _pad_rows(x, m_pad)
    grid = (m_pad // tm, N // tn, K // tk)
    out = pl.pallas_call(
        _matmul_kernel,
        out_shape=jax.ShapeDtypeStruct((m_pad, N), x.dtype),
        grid=grid,
        in_specs=[
            pl.BlockSpec((tm, tk), lambda i, j, k: (i, k)),
            pl.BlockSpec((tk, tn), lambda i, j, k: (k, j)),
            pl.BlockSpec((1, tn), lambda i, j, k: (0, j)),
        ],
        out_specs=pl.BlockSpec((tm, tn), lambda i, j, k: (i, j)),
        scratch_shapes=[pltpu.VMEM((tm, tn), jnp.float32)],
        compiler_params=_compiler_params(("parallel", "parallel", "arbitrary")),
    )(x_p, w, b.reshape(1, N))
    return out[:M] if m_pad != M else out


# ----------------------------------------------------------------------------
# Tiled matmul with residual+bias folded into acc init + fused LayerNorm epilogue
# ----------------------------------------------------------------------------
def _matmul_add_ln_kernel(x_ref, w_ref, b_ref, res_ref, g_ref, bb_ref,
                          o_ref, acc_ref, *, eps):
    k = pl.program_id(1)

    @pl.when(k == 0)
    def _():
        # Fold residual + bias into the accumulator init (shortens the epilogue).
        acc_ref[...] = (res_ref[...].astype(jnp.float32)
                        + b_ref[...].astype(jnp.float32))

    acc_ref[...] += jnp.dot(x_ref[...], w_ref[...],
                            preferred_element_type=jnp.float32)

    @pl.when(k == pl.num_programs(1) - 1)
    def _():
        z = acc_ref[...]
        mean = jnp.mean(z, axis=-1, keepdims=True)
        var = jnp.mean((z - mean) ** 2, axis=-1, keepdims=True)
        zn = (z - mean) * lax.rsqrt(var + eps)
        o_ref[...] = (zn * g_ref[...].astype(jnp.float32)
                      + bb_ref[...].astype(jnp.float32)).astype(o_ref.dtype)


def matmul_add_ln(x, w, b, res, gamma, beta, eps=1e-5, tm=512, tk=512):
    """LayerNorm(res + x @ w + b).  x: (M, K), w: (K, N), res: (M, N)."""
    M, K = x.shape
    _, N = w.shape
    tm, m_pad = _row_tile(M, tm)
    tk = _fit_tile(K, tk, 128)
    x_p = _pad_rows(x, m_pad)
    res_p = _pad_rows(res, m_pad)
    grid = (m_pad // tm, K // tk)
    out = pl.pallas_call(
        functools.partial(_matmul_add_ln_kernel, eps=eps),
        out_shape=jax.ShapeDtypeStruct((m_pad, N), x.dtype),
        grid=grid,
        in_specs=[
            pl.BlockSpec((tm, tk), lambda i, k: (i, k)),
            pl.BlockSpec((tk, N), lambda i, k: (k, 0)),
            pl.BlockSpec((1, N), lambda i, k: (0, 0)),
            pl.BlockSpec((tm, N), lambda i, k: (i, 0)),
            pl.BlockSpec((1, N), lambda i, k: (0, 0)),
            pl.BlockSpec((1, N), lambda i, k: (0, 0)),
        ],
        out_specs=pl.BlockSpec((tm, N), lambda i, k: (i, 0)),
        scratch_shapes=[pltpu.VMEM((tm, N), jnp.float32)],
        compiler_params=_compiler_params(("parallel", "arbitrary")),
    )(x_p, w, b.reshape(1, N), res_p, gamma.reshape(1, N), beta.reshape(1, N))
    return out[:M] if m_pad != M else out


# ----------------------------------------------------------------------------
# Fused FeedForward (w1 -> ReLU -> w2) + residual + LayerNorm, d_ff-tiled
# ----------------------------------------------------------------------------
def _ffn_ln_kernel(x_ref, w1_ref, b1_ref, w2_ref, b2_ref, g_ref, bb_ref,
                   o_ref, acc_ref, *, eps):
    f = pl.program_id(1)
    x = x_ref[...]

    @pl.when(f == 0)
    def _():
        # Fold residual (x) + second-linear bias into the accumulator init.
        acc_ref[...] = x.astype(jnp.float32) + b2_ref[...].astype(jnp.float32)

    h = jnp.dot(x, w1_ref[...], preferred_element_type=jnp.float32)
    h = jnp.maximum(h + b1_ref[...].astype(jnp.float32), 0.0)
    acc_ref[...] += jnp.dot(h.astype(x.dtype), w2_ref[...],
                            preferred_element_type=jnp.float32)

    @pl.when(f == pl.num_programs(1) - 1)
    def _():
        z = acc_ref[...]
        mean = jnp.mean(z, axis=-1, keepdims=True)
        var = jnp.mean((z - mean) ** 2, axis=-1, keepdims=True)
        zn = (z - mean) * lax.rsqrt(var + eps)
        o_ref[...] = (zn * g_ref[...].astype(jnp.float32)
                      + bb_ref[...].astype(jnp.float32)).astype(o_ref.dtype)


def ffn_add_ln(x, w1, b1, w2, b2, gamma, beta, eps=1e-5, tm=512, tf=512):
    """LayerNorm(x + (ReLU(x @ w1 + b1) @ w2 + b2)); d_ff axis is the (last) reduction."""
    M, D = x.shape
    _, F = w1.shape
    tm, m_pad = _row_tile(M, tm)
    tf = _fit_tile(F, tf, 128)
    x_p = _pad_rows(x, m_pad)
    grid = (m_pad // tm, F // tf)
    out = pl.pallas_call(
        functools.partial(_ffn_ln_kernel, eps=eps),
        out_shape=jax.ShapeDtypeStruct((m_pad, D), x.dtype),
        grid=grid,
        in_specs=[
            pl.BlockSpec((tm, D), lambda i, f: (i, 0)),
            pl.BlockSpec((D, tf), lambda i, f: (0, f)),
            pl.BlockSpec((1, tf), lambda i, f: (0, f)),
            pl.BlockSpec((tf, D), lambda i, f: (f, 0)),
            pl.BlockSpec((1, D), lambda i, f: (0, 0)),
            pl.BlockSpec((1, D), lambda i, f: (0, 0)),
            pl.BlockSpec((1, D), lambda i, f: (0, 0)),
        ],
        out_specs=pl.BlockSpec((tm, D), lambda i, f: (i, 0)),
        scratch_shapes=[pltpu.VMEM((tm, D), jnp.float32)],
        compiler_params=_compiler_params(("parallel", "arbitrary")),
    )(x_p, w1, b1.reshape(1, F), w2, b2.reshape(1, D),
      gamma.reshape(1, D), beta.reshape(1, D))
    return out[:M] if m_pad != M else out


# ----------------------------------------------------------------------------
# Flash-style multi-head self-attention: grid (batch, head, q-tile, kv-tile)
# ----------------------------------------------------------------------------
def _flash_attn_kernel(q_ref, k_ref, v_ref, o_ref, m_ref, l_ref, acc_ref, *, scale):
    ki = pl.program_id(3)

    @pl.when(ki == 0)
    def _():
        m_ref[...] = jnp.full_like(m_ref, -jnp.inf)
        l_ref[...] = jnp.zeros_like(l_ref)
        acc_ref[...] = jnp.zeros_like(acc_ref)

    # (tq, dh) . (tkv, dh)^T -> (tq, tkv) scores in f32 (never the full SxS).
    s = lax.dot_general(q_ref[...], k_ref[...], (((1,), (1,)), ((), ())),
                        preferred_element_type=jnp.float32) * scale
    m_prev = m_ref[...]
    m_new = jnp.maximum(m_prev, jnp.max(s, axis=-1, keepdims=True))
    alpha = jnp.exp(m_prev - m_new)
    p = jnp.exp(s - m_new)
    l_ref[...] = alpha * l_ref[...] + jnp.sum(p, axis=-1, keepdims=True)
    acc_ref[...] = alpha * acc_ref[...] + jnp.dot(
        p.astype(v_ref.dtype), v_ref[...], preferred_element_type=jnp.float32)
    m_ref[...] = m_new

    @pl.when(ki == pl.num_programs(3) - 1)
    def _():
        # Exact normalization (bit-friendlier than approx reciprocal).
        o_ref[...] = (acc_ref[...] / l_ref[...]).astype(o_ref.dtype)


def mha_attention(qkv, num_heads, tq=256, tkv=512):
    """qkv: (B, S, 3*D) fused projections -> (B, S, D) merged-head attention."""
    B, S, threeD = qkv.shape
    D = threeD // 3
    dh = D // num_heads
    scale = 1.0 / (dh ** 0.5)

    # Split into per-head (B, H, S, dh) slabs (lane-dense dh blocks, head grid axis).
    qkv_h = qkv.reshape(B, S, 3, num_heads, dh).transpose(2, 0, 3, 1, 4)
    q, k, v = qkv_h[0], qkv_h[1], qkv_h[2]

    # TODO(synk): sequence lengths that do not divide by the tiles fall back to a
    # full-S kv block; a masked/padded kv path would keep flash blocking for those.
    tq = _fit_tile(S, tq, 8)
    tkv = _fit_tile(S, tkv, 8)
    grid = (B, num_heads, S // tq, S // tkv)

    out = pl.pallas_call(
        functools.partial(_flash_attn_kernel, scale=scale),
        out_shape=jax.ShapeDtypeStruct((B, num_heads, S, dh), qkv.dtype),
        grid=grid,
        in_specs=[
            pl.BlockSpec((None, None, tq, dh), lambda b, h, qi, ki: (b, h, qi, 0)),
            pl.BlockSpec((None, None, tkv, dh), lambda b, h, qi, ki: (b, h, ki, 0)),
            pl.BlockSpec((None, None, tkv, dh), lambda b, h, qi, ki: (b, h, ki, 0)),
        ],
        out_specs=pl.BlockSpec((None, None, tq, dh),
                               lambda b, h, qi, ki: (b, h, qi, 0)),
        scratch_shapes=[
            pltpu.VMEM((tq, 1), jnp.float32),
            pltpu.VMEM((tq, 1), jnp.float32),
            pltpu.VMEM((tq, dh), jnp.float32),
        ],
        compiler_params=_compiler_params(
            ("parallel", "parallel", "parallel", "arbitrary")),
    )(q, k, v)
    # (B, H, S, dh) -> (B, S, D) merged-head layout for the output projection.
    return out.transpose(0, 2, 1, 3).reshape(B, S, D)


# ----------------------------------------------------------------------------
# Transformer encoder (thin JAX glue around the Pallas kernels)
# ----------------------------------------------------------------------------
def encoder_block(x, p, num_heads):
    B, S, D = x.shape
    x2d = x.reshape(B * S, D)

    # Fused QKV projection: one matmul kernel, one HBM pass over x.
    qkv = matmul_bias(x2d, p["wqkv"], p["bqkv"])                  # (B*S, 3D)
    attn = mha_attention(qkv.reshape(B, S, 3 * D), num_heads)     # (B, S, D)

    # Output projection with fused residual-add + LayerNorm1.
    x1 = matmul_add_ln(attn.reshape(B * S, D), p["wo"], p["bo"],
                       x2d, p["ln1_g"], p["ln1_b"])

    # d_ff-tiled FFN + residual + LayerNorm2.
    # TODO(synk): the original module builds LayerNorm2 with d_ff features while the
    # residual sum has d_model features; it is only well-defined when d_ff == d_model,
    # which we require for the LN2 parameters here.
    x2 = ffn_add_ln(x1, p["w1"], p["b1"], p["w2"], p["b2"],
                    p["ln2_g"], p["ln2_b"])
    return x2.reshape(B, S, D)


def transformer_encoder(x, params, num_heads):
    for p in params:
        x = encoder_block(x, p, num_heads)
    return x


def init_block_params(key, d_model, d_ff, dtype=jnp.bfloat16):
    ks = jax.random.split(key, 4)
    std = 0.02

    def w(k, shape):
        return (jax.random.normal(k, shape, jnp.float32) * std).astype(dtype)

    return {
        "wqkv": w(ks[0], (d_model, 3 * d_model)),
        "bqkv": jnp.zeros((3 * d_model,), dtype),
        "wo": w(ks[1], (d_model, d_model)),
        "bo": jnp.zeros((d_model,), dtype),
        "ln1_g": jnp.ones((d_model,), dtype),
        "ln1_b": jnp.zeros((d_model,), dtype),
        "w1": w(ks[2], (d_model, d_ff)),
        "b1": jnp.zeros((d_ff,), dtype),
        "w2": w(ks[3], (d_ff, d_model)),
        "b2": jnp.zeros((d_model,), dtype),
        "ln2_g": jnp.ones((d_model,), dtype),
        "ln2_b": jnp.zeros((d_model,), dtype),
    }


if __name__ == "__main__":
    # Small smoke-test config consistent with the module (d_model divisible by
    # num_heads, d_ff == d_model so LayerNorm2's feature count matches the residual).
    batch, seq = 2, 8
    d_model, d_ff, num_heads, num_blocks = 32, 32, 4, 2

    root = jax.random.PRNGKey(0)
    k_inp, k_par = jax.random.split(root)
    x = jax.random.normal(k_inp, (batch, seq, d_model), jnp.float32)
    x = x.astype(jnp.bfloat16)

    block_keys = jax.random.split(k_par, num_blocks)
    params = [init_block_params(bk, d_model, d_ff) for bk in block_keys]

    encoder = jax.jit(functools.partial(transformer_encoder, num_heads=num_heads))
    out = jax.block_until_ready(encoder(x, params))
    assert out.shape == (batch, seq, d_model)
    assert bool(jnp.all(jnp.isfinite(out.astype(jnp.float32))))
    print("KERNEL_OK")
</pallas_src>

<mosaic_0001>
module attributes {stable_mosaic.version = 11 : i64} {
  func.func @_matmul_kernel(%arg0: i32, %arg1: i32, %arg2: i32, %arg3: memref<16x32xbf16, #tpu.memory_space<vmem>>, %arg4: memref<32x96xbf16, #tpu.memory_space<vmem>>, %arg5: memref<1x96xbf16, #tpu.memory_space<vmem>>, %arg6: memref<16x96xbf16, #tpu.memory_space<vmem>>, %arg7: memref<16x96xf32, #tpu.memory_space<vmem>>) attributes {dimension_semantics = [#tpu.dimension_semantics<parallel>, #tpu.dimension_semantics<parallel>, #tpu.dimension_semantics<arbitrary>], iteration_bounds = array<i64: 1, 1, 1>, scalar_prefetch = 0 : i64, scratch_operands = 1 : i64, tpu.core_type = #tpu.core_type<tc>, window_params = [{transform_indices = @transform_0, window_bounds = array<i64: 16, 32>}, {transform_indices = @transform_1, window_bounds = array<i64: 32, 96>}, {transform_indices = @transform_2, window_bounds = array<i64: 1, 96>}, {transform_indices = @transform_3, window_bounds = array<i64: 16, 96>}]} {
    %c0_i32 = arith.constant 0 : i32
    %0 = arith.cmpi eq, %arg2, %c0_i32 : i32
    %1 = arith.extui %0 : i1 to i32
    %c0_i32_0 = arith.constant 0 : i32
    %2 = arith.cmpi ne, %1, %c0_i32_0 : i32
    scf.if %2 {
      %cst_10 = arith.constant 0.000000e+00 : f32
      %12 = vector.broadcast %cst_10 : f32 to vector<16x96xf32>
      %c0_11 = arith.constant 0 : index
      %c0_12 = arith.constant 0 : index
      %13 = vector.load %arg7[%c0_11, %c0_12] : memref<16x96xf32, #tpu.memory_space<vmem>>, vector<16x96xf32>
      tpu.vector_store %arg7[%c0_11, %c0_12], %12 {strides = array<i32>} : memref<16x96xf32, #tpu.memory_space<vmem>>, vector<16x96xf32>,
    } else {
    }
    %c0 = arith.constant 0 : index
    %c0_1 = arith.constant 0 : index
    %3 = vector.load %arg7[%c0, %c0_1] : memref<16x96xf32, #tpu.memory_space<vmem>>, vector<16x96xf32>
    %c0_2 = arith.constant 0 : index
    %c0_3 = arith.constant 0 : index
    %4 = vector.load %arg3[%c0_2, %c0_3] : memref<16x32xbf16, #tpu.memory_space<vmem>>, vector<16x32xbf16>
    %c0_4 = arith.constant 0 : index
    %c0_5 = arith.constant 0 : index
    %5 = vector.load %arg4[%c0_4, %c0_5] : memref<32x96xbf16, #tpu.memory_space<vmem>>, vector<32x96xbf16>
    %cst = arith.constant dense<0.000000e+00> : vector<16x96xf32>
    %6 = tpu.matmul %4, %5, %cst {dimension_numbers = #tpu.dot_dimension_numbers<[1], [0], [0], [1], [0, 0, 1, 1], [], []>} : vector<16x32xbf16>, vector<32x96xbf16>, vector<16x96xf32> -> vector<16x96xf32>
    %7 = arith.addf %3, %6 : vector<16x96xf32>
    %c0_6 = arith.constant 0 : index
    %c0_7 = arith.constant 0 : index
    %8 = vector.load %arg7[%c0_6, %c0_7] : memref<16x96xf32, #tpu.memory_space<vmem>>, vector<16x96xf32>
    tpu.vector_store %arg7[%c0_6, %c0_7], %7 {strides = array<i32>} : memref<16x96xf32, #tpu.memory_space<vmem>>, vector<16x96xf32>,
    %c0_i32_8 = arith.constant 0 : i32
    %9 = arith.cmpi eq, %arg2, %c0_i32_8 : i32
    %10 = arith.extui %9 : i1 to i32
    %c0_i32_9 = arith.constant 0 : i32
    %11 = arith.cmpi ne, %10, %c0_i32_9 : i32
    scf.if %11 {
      %c0_10 = arith.constant 0 : index
      %c0_11 = arith.constant 0 : index
      %12 = vector.load %arg7[%c0_10, %c0_11] : memref<16x96xf32, #tpu.memory_space<vmem>>, vector<16x96xf32>
      %c0_12 = arith.constant 0 : index
      %c0_13 = arith.constant 0 : index
      %13 = vector.load %arg5[%c0_12, %c0_13] : memref<1x96xbf16, #tpu.memory_space<vmem>>, vector<1x96xbf16>
      %14 = arith.extf %13 : vector<1x96xbf16> to vector<1x96xf32>
      %15 = vector.broadcast %14 : vector<1x96xf32> to vector<16x96xf32>
      %16 = arith.addf %12, %15 : vector<16x96xf32>
      %17 = arith.truncf %16 : vector<16x96xf32> to vector<16x96xbf16>
      %c0_14 = arith.constant 0 : index
      %c0_15 = arith.constant 0 : index
      %18 = vector.load %arg6[%c0_14, %c0_15] : memref<16x96xbf16, #tpu.memory_space<vmem>>, vector<16x96xbf16>
      tpu.vector_store %arg6[%c0_14, %c0_15], %17 {strides = array<i32>} : memref<16x96xbf16, #tpu.memory_space<vmem>>, vector<16x96xbf16>,
    } else {
    }
    return
  }
  func.func @transform_0(%arg0: i32, %arg1: i32, %arg2: i32) -> (i32, i32) {
    %c0_i32 = arith.constant 0 : i32
    return %arg0, %arg2 : i32, i32
  }
  func.func @transform_1(%arg0: i32, %arg1: i32, %arg2: i32) -> (i32, i32) {
    %c0_i32 = arith.constant 0 : i32
    return %arg2, %arg1 : i32, i32
  }
  func.func @transform_2(%arg0: i32, %arg1: i32, %arg2: i32) -> (i32, i32) {
    %c0_i32 = arith.constant 0 : i32
    %c0_i32_0 = arith.constant 0 : i32
    return %c0_i32, %arg1 : i32, i32
  }
  func.func @transform_3(%arg0: i32, %arg1: i32, %arg2: i32) -> (i32, i32) {
    %c0_i32 = arith.constant 0 : i32
    return %arg0, %arg1 : i32, i32
  }
}

module attributes {stable_mosaic.version = 11 : i64} {
  func.func @_ffn_ln_kernel(%arg0: i32, %arg1: i32, %arg2: memref<16x32xbf16, #tpu.memory_space<vmem>>, %arg3: memref<32x32xbf16, #tpu.memory_space<vmem>>, %arg4: memref<1x32xbf16, #tpu.memory_space<vmem>>, %arg5: memref<32x32xbf16, #tpu.memory_space<vmem>>, %arg6: memref<1x32xbf16, #tpu.memory_space<vmem>>, %arg7: memref<1x32xbf16, #tpu.memory_space<vmem>>, %arg8: memref<1x32xbf16, #tpu.memory_space<vmem>>, %arg9: memref<16x32xbf16, #tpu.memory_space<vmem>>, %arg10: memref<16x32xf32, #tpu.memory_space<vmem>>) attributes {dimension_semantics = [#tpu.dimension_semantics<parallel>, #tpu.dimension_semantics<arbitrary>], iteration_bounds = array<i64: 1, 1>, scalar_prefetch = 0 : i64, scratch_operands = 1 : i64, tpu.core_type = #tpu.core_type<tc>, window_params = [{transform_indices = @transform_0, window_bounds = array<i64: 16, 32>}, {transform_indices = @transform_1, window_bounds = array<i64: 32, 32>}, {transform_indices = @transform_2, window_bounds = array<i64: 1, 32>}, {transform_indices = @transform_3, window_bounds = array<i64: 32, 32>}, {pipeline_mode = #tpu.pipeline_mode<synchronous>, transform_indices = @transform_4, window_bounds = array<i64: 1, 32>}, {pipeline_mode = #tpu.pipeline_mode<synchronous>, transform_indices = @transform_5, window_bounds = array<i64: 1, 32>}, {pipeline_mode = #tpu.pipeline_mode<synchronous>, transform_indices = @transform_6, window_bounds = array<i64: 1, 32>}, {transform_indices = @transform_7, window_bounds = array<i64: 16, 32>}]} {
    %c0 = arith.constant 0 : index
    %c0_0 = arith.constant 0 : index
    %0 = vector.load %arg2[%c0, %c0_0] : memref<16x32xbf16, #tpu.memory_space<vmem>>, vector<16x32xbf16>
    %c0_i32 = arith.constant 0 : i32
    %1 = arith.cmpi eq, %arg1, %c0_i32 : i32
    %2 = arith.extui %1 : i1 to i32
    %c0_i32_1 = arith.constant 0 : i32
    %3 = arith.cmpi ne, %2, %c0_i32_1 : i32
    scf.if %3 {
      %21 = arith.extf %0 : vector<16x32xbf16> to vector<16x32xf32>
      %c0_16 = arith.constant 0 : index
      %c0_17 = arith.constant 0 : index
      %22 = vector.load %arg6[%c0_16, %c0_17] : memref<1x32xbf16, #tpu.memory_space<vmem>>, vector<1x32xbf16>
      %23 = arith.extf %22 : vector<1x32xbf16> to vector<1x32xf32>
      %24 = vector.broadcast %23 : vector<1x32xf32> to vector<16x32xf32>
      %25 = arith.addf %21, %24 : vector<16x32xf32>
      %c0_18 = arith.constant 0 : index
      %c0_19 = arith.constant 0 : index
      %26 = vector.load %arg10[%c0_18, %c0_19] : memref<16x32xf32, #tpu.memory_space<vmem>>, vector<16x32xf32>
      tpu.vector_store %arg10[%c0_18, %c0_19], %25 {strides = array<i32>} : memref<16x32xf32, #tpu.memory_space<vmem>>, vector<16x32xf32>,
    } else {
    }
    %c0_2 = arith.constant 0 : index
    %c0_3 = arith.constant 0 : index
    %4 = vector.load %arg3[%c0_2, %c0_3] : memref<32x32xbf16, #tpu.memory_space<vmem>>, vector<32x32xbf16>
    %cst = arith.constant dense<0.000000e+00> : vector<16x32xf32>
    %5 = tpu.matmul %0, %4, %cst {dimension_numbers = #tpu.dot_dimension_numbers<[1], [0], [0], [1], [0, 0, 1, 1], [], []>} : vector<16x32xbf16>, vector<32x32xbf16>, vector<16x32xf32> -> vector<16x32xf32>
    %c0_4 = arith.constant 0 : index
    %c0_5 = arith.constant 0 : index
    %6 = vector.load %arg4[%c0_4, %c0_5] : memref<1x32xbf16, #tpu.memory_space<vmem>>, vector<1x32xbf16>
    %7 = arith.extf %6 : vector<1x32xbf16> to vector<1x32xf32>
    %8 = vector.broadcast %7 : vector<1x32xf32> to vector<16x32xf32>
    %9 = arith.addf %5, %8 : vector<16x32xf32>
    %cst_6 = arith.constant 0.000000e+00 : f32
    %10 = vector.broadcast %cst_6 : f32 to vector<16x32xf32>
    %11 = arith.maximumf %9, %10 : vector<16x32xf32>
    %c0_7 = arith.constant 0 : index
    %c0_8 = arith.constant 0 : index
    %12 = vector.load %arg10[%c0_7, %c0_8] : memref<16x32xf32, #tpu.memory_space<vmem>>, vector<16x32xf32>
    %13 = arith.truncf %11 : vector<16x32xf32> to vector<16x32xbf16>
    %c0_9 = arith.constant 0 : index
    %c0_10 = arith.constant 0 : index
    %14 = vector.load %arg5[%c0_9, %c0_10] : memref<32x32xbf16, #tpu.memory_space<vmem>>, vector<32x32xbf16>
    %cst_11 = arith.constant dense<0.000000e+00> : vector<16x32xf32>
    %15 = tpu.matmul %13, %14, %cst_11 {dimension_numbers = #tpu.dot_dimension_numbers<[1], [0], [0], [1], [0, 0, 1, 1], [], []>} : vector<16x32xbf16>, vector<32x32xbf16>, vector<16x32xf32> -> vector<16x32xf32>
    %16 = arith.addf %12, %15 : vector<16x32xf32>
    %c0_12 = arith.constant 0 : index
    %c0_13 = arith.constant 0 : index
    %17 = vector.load %arg10[%c0_12, %c0_13] : memref<16x32xf32, #tpu.memory_space<vmem>>, vector<16x32xf32>
    tpu.vector_store %arg10[%c0_12, %c0_13], %16 {strides = array<i32>} : memref<16x32xf32, #tpu.memory_space<vmem>>, vector<16x32xf32>,
    %c0_i32_14 = arith.constant 0 : i32
    %18 = arith.cmpi eq, %arg1, %c0_i32_14 : i32
    %19 = arith.extui %18 : i1 to i32
    %c0_i32_15 = arith.constant 0 : i32
    %20 = arith.cmpi ne, %19, %c0_i32_15 : i32
    scf.if %20 {
      %c0_16 = arith.constant 0 : index
      %c0_17 = arith.constant 0 : index
      %21 = vector.load %arg10[%c0_16, %c0_17] : memref<16x32xf32, #tpu.memory_space<vmem>>, vector<16x32xf32>
      %cst_18 = arith.constant dense<0.000000e+00> : vector<16xf32>
      %22 = vector.multi_reduction <add>, %21, %cst_18 [1] : vector<16x32xf32> to vector<16xf32>
      %23 = vector.shape_cast %22 : vector<16xf32> to vector<16x1xf32>
      %cst_19 = arith.constant 3.200000e+01 : f32
      %24 = vector.broadcast %cst_19 : f32 to vector<16x1xf32>
      %25 = arith.divf %23, %24 : vector<16x1xf32>
      %26 = vector.broadcast %25 : vector<16x1xf32> to vector<16x32xf32>
      %27 = arith.subf %21, %26 : vector<16x32xf32>
      %28 = arith.mulf %27, %27 : vector<16x32xf32>
      %cst_20 = arith.constant dense<0.000000e+00> : vector<16xf32>
      %29 = vector.multi_reduction <add>, %28, %cst_20 [1] : vector<16x32xf32> to vector<16xf32>
      %30 = vector.shape_cast %29 : vector<16xf32> to vector<16x1xf32>
      %cst_21 = arith.constant 3.200000e+01 : f32
      %31 = vector.broadcast %cst_21 : f32 to vector<16x1xf32>
      %32 = arith.divf %30, %31 : vector<16x1xf32>
      %33 = vector.broadcast %25 : vector<16x1xf32> to vector<16x32xf32>
      %34 = arith.subf %21, %33 : vector<16x32xf32>
      %cst_22 = arith.constant 9.99999974E-6 : f32
      %35 = vector.broadcast %cst_22 : f32 to vector<16x1xf32>
      %36 = arith.addf %32, %35 : vector<16x1xf32>
      %37 = math.rsqrt %36 : vector<16x1xf32>
      %38 = vector.broadcast %37 : vector<16x1xf32> to vector<16x32xf32>
      %39 = arith.mulf %34, %38 : vector<16x32xf32>
      %c0_23 = arith.constant 0 : index
      %c0_24 = arith.constant 0 : index
      %40 = vector.load %arg7[%c0_23, %c0_24] : memref<1x32xbf16, #tpu.memory_space<vmem>>, vector<1x32xbf16>
      %41 = arith.extf %40 : vector<1x32xbf16> to vector<1x32xf32>
      %42 = vector.broadcast %41 : vector<1x32xf32> to vector<16x32xf32>
      %43 = arith.mulf %39, %42 : vector<16x32xf32>
      %c0_25 = arith.constant 0 : index
      %c0_26 = arith.constant 0 : index
      %44 = vector.load %arg8[%c0_25, %c0_26] : memref<1x32xbf16, #tpu.memory_space<vmem>>, vector<1x32xbf16>
      %45 = arith.extf %44 : vector<1x32xbf16> to vector<1x32xf32>
      %46 = vector.broadcast %45 : vector<1x32xf32> to vector<16x32xf32>
      %47 = arith.addf %43, %46 : vector<16x32xf32>
      %48 = arith.truncf %47 : vector<16x32xf32> to vector<16x32xbf16>
      %c0_27 = arith.constant 0 : index
      %c0_28 = arith.constant 0 : index
      %49 = vector.load %arg9[%c0_27, %c0_28] : memref<16x32xbf16, #tpu.memory_space<vmem>>, vector<16x32xbf16>
      tpu.vector_store %arg9[%c0_27, %c0_28], %48 {strides = array<i32>} : memref<16x32xbf16, #tpu.memory_space<vmem>>, vector<16x32xbf16>,
    } else {
    }
    return
  }
  func.func @transform_0(%arg0: i32, %arg1: i32) -> (i32, i32) {
    %c0_i32 = arith.constant 0 : i32
    %c0_i32_0 = arith.constant 0 : i32
    return %arg0, %c0_i32 : i32, i32
  }
  func.func @transform_1(%arg0: i32, %arg1: i32) -> (i32, i32) {
    %c0_i32 = arith.constant 0 : i32
    %c0_i32_0 = arith.constant 0 : i32
    return %c0_i32, %arg1 : i32, i32
  }
  func.func @transform_2(%arg0: i32, %arg1: i32) -> (i32, i32) {
    %c0_i32 = arith.constant 0 : i32
    %c0_i32_0 = arith.constant 0 : i32
    return %c0_i32, %arg1 : i32, i32
  }
  func.func @transform_3(%arg0: i32, %arg1: i32) -> (i32, i32) {
    %c0_i32 = arith.constant 0 : i32
    %c0_i32_0 = arith.constant 0 : i32
    return %arg1, %c0_i32 : i32, i32
  }
  func.func @transform_4(%arg0: i32, %arg1: i32) -> (i32, i32) {
    %c0_i32 = arith.constant 0 : i32
    %c0_i32_0 = arith.constant 0 : i32
    %c0_i32_1 = arith.constant 0 : i32
    return %c0_i32, %c0_i32_0 : i32, i32
  }
  func.func @transform_5(%arg0: i32, %arg1: i32) -> (i32, i32) {
    %c0_i32 = arith.constant 0 : i32
    %c0_i32_0 = arith.constant 0 : i32
    %c0_i32_1 = arith.constant 0 : i32
    return %c0_i32, %c0_i32_0 : i32, i32
  }
  func.func @transform_6(%arg0: i32, %arg1: i32) -> (i32, i32) {
    %c0_i32 = arith.constant 0 : i32
    %c0_i32_0 = arith.constant 0 : i32
    %c0_i32_1 = arith.constant 0 : i32
    return %c0_i32, %c0_i32_0 : i32, i32
  }
  func.func @transform_7(%arg0: i32, %arg1: i32) -> (i32, i32) {
    %c0_i32 = arith.constant 0 : i32
    %c0_i32_0 = arith.constant 0 : i32
    return %arg0, %c0_i32 : i32, i32
  }
}

module attributes {stable_mosaic.version = 11 : i64} {
  func.func @_flash_attn_kernel(%arg0: i32, %arg1: i32, %arg2: i32, %arg3: i32, %arg4: memref<1x1x8x8xbf16, #tpu.memory_space<vmem>>, %arg5: memref<1x1x8x8xbf16, #tpu.memory_space<vmem>>, %arg6: memref<1x1x8x8xbf16, #tpu.memory_space<vmem>>, %arg7: memref<1x1x8x8xbf16, #tpu.memory_space<vmem>>, %arg8: memref<8x1xf32, #tpu.memory_space<vmem>>, %arg9: memref<8x1xf32, #tpu.memory_space<vmem>>, %arg10: memref<8x8xf32, #tpu.memory_space<vmem>>) attributes {dimension_semantics = [#tpu.dimension_semantics<parallel>, #tpu.dimension_semantics<parallel>, #tpu.dimension_semantics<parallel>, #tpu.dimension_semantics<arbitrary>], iteration_bounds = array<i64: 2, 4, 1, 1>, scalar_prefetch = 0 : i64, scratch_operands = 3 : i64, tpu.core_type = #tpu.core_type<tc>, window_params = [{transform_indices = @transform_0, window_bounds = array<i64: 1, 1, 8, 8>}, {transform_indices = @transform_1, window_bounds = array<i64: 1, 1, 8, 8>}, {transform_indices = @transform_2, window_bounds = array<i64: 1, 1, 8, 8>}, {transform_indices = @transform_3, window_bounds = array<i64: 1, 1, 8, 8>}]} {
    %c0_i32 = arith.constant 0 : i32
    %0 = arith.cmpi eq, %arg3, %c0_i32 : i32
    %1 = arith.extui %0 : i1 to i32
    %c0_i32_0 = arith.constant 0 : i32
    %2 = arith.cmpi ne, %1, %c0_i32_0 : i32
    scf.if %2 {
      %cst_30 = arith.constant 0xFF800000 : f32
      %38 = vector.broadcast %cst_30 : f32 to vector<8x1xf32>
      %c0_31 = arith.constant 0 : index
      %c0_32 = arith.constant 0 : index
      %39 = vector.load %arg8[%c0_31, %c0_32] : memref<8x1xf32, #tpu.memory_space<vmem>>, vector<8x1xf32>
      tpu.vector_store %arg8[%c0_31, %c0_32], %38 {strides = array<i32>} : memref<8x1xf32, #tpu.memory_space<vmem>>, vector<8x1xf32>,
      %cst_33 = arith.constant 0.000000e+00 : f32
      %40 = vector.broadcast %cst_33 : f32 to vector<8x1xf32>
      %c0_34 = arith.constant 0 : index
      %c0_35 = arith.constant 0 : index
      %41 = vector.load %arg9[%c0_34, %c0_35] : memref<8x1xf32, #tpu.memory_space<vmem>>, vector<8x1xf32>
      tpu.vector_store %arg9[%c0_34, %c0_35], %40 {strides = array<i32>} : memref<8x1xf32, #tpu.memory_space<vmem>>, vector<8x1xf32>,
      %cst_36 = arith.constant 0.000000e+00 : f32
      %42 = vector.broadcast %cst_36 : f32 to vector<8x8xf32>
      %c0_37 = arith.constant 0 : index
      %c0_38 = arith.constant 0 : index
      %43 = vector.load %arg10[%c0_37, %c0_38] : memref<8x8xf32, #tpu.memory_space<vmem>>, vector<8x8xf32>
      tpu.vector_store %arg10[%c0_37, %c0_38], %42 {strides = array<i32>} : memref<8x8xf32, #tpu.memory_space<vmem>>, vector<8x8xf32>,
    } else {
    }
    %c0 = arith.constant 0 : index
    %c0_1 = arith.constant 0 : index
    %c0_2 = arith.constant 0 : index
    %c0_3 = arith.constant 0 : index
    %3 = vector.load %arg4[%c0, %c0_1, %c0_2, %c0_3] : memref<1x1x8x8xbf16, #tpu.memory_space<vmem>>, vector<1x1x8x8xbf16>
    %4 = vector.shape_cast %3 : vector<1x1x8x8xbf16> to vector<8x8xbf16>
    %c0_4 = arith.constant 0 : index
    %c0_5 = arith.constant 0 : index
    %c0_6 = arith.constant 0 : index
    %c0_7 = arith.constant 0 : index
    %5 = vector.load %arg5[%c0_4, %c0_5, %c0_6, %c0_7] : memref<1x1x8x8xbf16, #tpu.memory_space<vmem>>, vector<1x1x8x8xbf16>
    %6 = vector.shape_cast %5 : vector<1x1x8x8xbf16> to vector<8x8xbf16>
    %cst = arith.constant dense<0.000000e+00> : vector<8x8xf32>
    %7 = tpu.matmul %4, %6, %cst {dimension_numbers = #tpu.dot_dimension_numbers<[1], [1], [0], [0], [0, 0, 1, 0], [], []>} : vector<8x8xbf16>, vector<8x8xbf16>, vector<8x8xf32> -> vector<8x8xf32>
    %cst_8 = arith.constant 0.353553385 : f32
    %8 = vector.broadcast %cst_8 : f32 to vector<8x8xf32>
    %9 = arith.mulf %7, %8 : vector<8x8xf32>
    %c0_9 = arith.constant 0 : index
    %c0_10 = arith.constant 0 : index
    %10 = vector.load %arg8[%c0_9, %c0_10] : memref<8x1xf32, #tpu.memory_space<vmem>>, vector<8x1xf32>
    %cst_11 = arith.constant dense<0xFF800000> : vector<8xf32>
    %11 = vector.multi_reduction <maximumf>, %9, %cst_11 [1] : vector<8x8xf32> to vector<8xf32>
    %12 = vector.shape_cast %11 : vector<8xf32> to vector<8x1xf32>
    %13 = arith.maximumf %10, %12 : vector<8x1xf32>
    %14 = arith.subf %10, %13 : vector<8x1xf32>
    %15 = math.exp %14 : vector<8x1xf32>
    %16 = vector.broadcast %13 : vector<8x1xf32> to vector<8x8xf32>
    %17 = arith.subf %9, %16 : vector<8x8xf32>
    %18 = math.exp %17 : vector<8x8xf32>
    %c0_12 = arith.constant 0 : index
    %c0_13 = arith.constant 0 : index
    %19 = vector.load %arg9[%c0_12, %c0_13] : memref<8x1xf32, #tpu.memory_space<vmem>>, vector<8x1xf32>
    %20 = arith.mulf %15, %19 : vector<8x1xf32>
    %cst_14 = arith.constant dense<0.000000e+00> : vector<8xf32>
    %21 = vector.multi_reduction <add>, %18, %cst_14 [1] : vector<8x8xf32> to vector<8xf32>
    %22 = vector.shape_cast %21 : vector<8xf32> to vector<8x1xf32>
    %23 = arith.addf %20, %22 : vector<8x1xf32>
    %c0_15 = arith.constant 0 : index
    %c0_16 = arith.constant 0 : index
    %24 = vector.load %arg9[%c0_15, %c0_16] : memref<8x1xf32, #tpu.memory_space<vmem>>, vector<8x1xf32>
    tpu.vector_store %arg9[%c0_15, %c0_16], %23 {strides = array<i32>} : memref<8x1xf32, #tpu.memory_space<vmem>>, vector<8x1xf32>,
    %c0_17 = arith.constant 0 : index
    %c0_18 = arith.constant 0 : index
    %25 = vector.load %arg10[%c0_17, %c0_18] : memref<8x8xf32, #tpu.memory_space<vmem>>, vector<8x8xf32>
    %26 = vector.broadcast %15 : vector<8x1xf32> to vector<8x8xf32>
    %27 = arith.mulf %26, %25 : vector<8x8xf32>
    %28 = arith.truncf %18 : vector<8x8xf32> to vector<8x8xbf16>
    %c0_19 = arith.constant 0 : index
    %c0_20 = arith.constant 0 : index
    %c0_21 = arith.constant 0 : index
    %c0_22 = arith.constant 0 : index
    %29 = vector.load %arg6[%c0_19, %c0_20, %c0_21, %c0_22] : memref<1x1x8x8xbf16, #tpu.memory_space<vmem>>, vector<1x1x8x8xbf16>
    %30 = vector.shape_cast %29 : vector<1x1x8x8xbf16> to vector<8x8xbf16>
    %cst_23 = arith.constant dense<0.000000e+00> : vector<8x8xf32>
    %31 = tpu.matmul %28, %30, %cst_23 {dimension_numbers = #tpu.dot_dimension_numbers<[1], [0], [0], [1], [0, 0, 1, 1], [], []>} : vector<8x8xbf16>, vector<8x8xbf16>, vector<8x8xf32> -> vector<8x8xf32>
    %32 = arith.addf %27, %31 : vector<8x8xf32>
    %c0_24 = arith.constant 0 : index
    %c0_25 = arith.constant 0 : index
    %33 = vector.load %arg10[%c0_24, %c0_25] : memref<8x8xf32, #tpu.memory_space<vmem>>, vector<8x8xf32>
    tpu.vector_store %arg10[%c0_24, %c0_25], %32 {strides = array<i32>} : memref<8x8xf32, #tpu.memory_space<vmem>>, vector<8x8xf32>,
    %c0_26 = arith.constant 0 : index
    %c0_27 = arith.constant 0 : index
    %34 = vector.load %arg8[%c0_26, %c0_27] : memref<8x1xf32, #tpu.memory_space<vmem>>, vector<8x1xf32>
    tpu.vector_store %arg8[%c0_26, %c0_27], %13 {strides = array<i32>} : memref<8x1xf32, #tpu.memory_space<vmem>>, vector<8x1xf32>,
    %c0_i32_28 = arith.constant 0 : i32
    %35 = arith.cmpi eq, %arg3, %c0_i32_28 : i32
    %36 = arith.extui %35 : i1 to i32
    %c0_i32_29 = arith.constant 0 : i32
    %37 = arith.cmpi ne, %36, %c0_i32_29 : i32
    scf.if %37 {
      %c0_30 = arith.constant 0 : index
      %c0_31 = arith.constant 0 : index
      %38 = vector.load %arg10[%c0_30, %c0_31] : memref<8x8xf32, #tpu.memory_space<vmem>>, vector<8x8xf32>
      %c0_32 = arith.constant 0 : index
      %c0_33 = arith.constant 0 : index
      %39 = vector.load %arg9[%c0_32, %c0_33] : memref<8x1xf32, #tpu.memory_space<vmem>>, vector<8x1xf32>
      %40 = vector.broadcast %39 : vector<8x1xf32> to vector<8x8xf32>
      %41 = arith.divf %38, %40 : vector<8x8xf32>
      %42 = arith.truncf %41 : vector<8x8xf32> to vector<8x8xbf16>
      %c0_34 = arith.constant 0 : index
      %c0_35 = arith.constant 0 : index
      %c0_36 = arith.constant 0 : index
      %c0_37 = arith.constant 0 : index
      %43 = vector.load %arg7[%c0_34, %c0_35, %c0_36, %c0_37] : memref<1x1x8x8xbf16, #tpu.memory_space<vmem>>, vector<1x1x8x8xbf16>
      %44 = vector.shape_cast %43 : vector<1x1x8x8xbf16> to vector<8x8xbf16>
      %45 = vector.shape_cast %42 : vector<8x8xbf16> to vector<1x1x8x8xbf16>
      tpu.vector_store %arg7[%c0_34, %c0_35, %c0_36, %c0_37], %45 {strides = array<i32>} : memref<1x1x8x8xbf16, #tpu.memory_space<vmem>>, vector<1x1x8x8xbf16>,
    } else {
    }
    return
  }
  func.func @transform_0(%arg0: i32, %arg1: i32, %arg2: i32, %arg3: i32) -> (i32, i32, i32, i32) {
    %c0_i32 = arith.constant 0 : i32
    %c0_i32_0 = arith.constant 0 : i32
    return %arg0, %arg1, %arg2, %c0_i32 : i32, i32, i32, i32
  }
  func.func @transform_1(%arg0: i32, %arg1: i32, %arg2: i32, %arg3: i32) -> (i32, i32, i32, i32) {
    %c0_i32 = arith.constant 0 : i32
    %c0_i32_0 = arith.constant 0 : i32
    return %arg0, %arg1, %arg3, %c0_i32 : i32, i32, i32, i32
  }
  func.func @transform_2(%arg0: i32, %arg1: i32, %arg2: i32, %arg3: i32) -> (i32, i32, i32, i32) {
    %c0_i32 = arith.constant 0 : i32
    %c0_i32_0 = arith.constant 0 : i32
    return %arg0, %arg1, %arg3, %c0_i32 : i32, i32, i32, i32
  }
  func.func @transform_3(%arg0: i32, %arg1: i32, %arg2: i32, %arg3: i32) -> (i32, i32, i32, i32) {
    %c0_i32 = arith.constant 0 : i32
    %c0_i32_0 = arith.constant 0 : i32
    return %arg0, %arg1, %arg2, %c0_i32 : i32, i32, i32, i32
  }
}

module attributes {stable_mosaic.version = 11 : i64} {
  func.func @_matmul_add_ln_kernel(%arg0: i32, %arg1: i32, %arg2: memref<16x32xbf16, #tpu.memory_space<vmem>>, %arg3: memref<32x32xbf16, #tpu.memory_space<vmem>>, %arg4: memref<1x32xbf16, #tpu.memory_space<vmem>>, %arg5: memref<16x32xbf16, #tpu.memory_space<vmem>>, %arg6: memref<1x32xbf16, #tpu.memory_space<vmem>>, %arg7: memref<1x32xbf16, #tpu.memory_space<vmem>>, %arg8: memref<16x32xbf16, #tpu.memory_space<vmem>>, %arg9: memref<16x32xf32, #tpu.memory_space<vmem>>) attributes {dimension_semantics = [#tpu.dimension_semantics<parallel>, #tpu.dimension_semantics<arbitrary>], iteration_bounds = array<i64: 1, 1>, scalar_prefetch = 0 : i64, scratch_operands = 1 : i64, tpu.core_type = #tpu.core_type<tc>, window_params = [{transform_indices = @transform_0, window_bounds = array<i64: 16, 32>}, {transform_indices = @transform_1, window_bounds = array<i64: 32, 32>}, {pipeline_mode = #tpu.pipeline_mode<synchronous>, transform_indices = @transform_2, window_bounds = array<i64: 1, 32>}, {transform_indices = @transform_3, window_bounds = array<i64: 16, 32>}, {pipeline_mode = #tpu.pipeline_mode<synchronous>, transform_indices = @transform_4, window_bounds = array<i64: 1, 32>}, {pipeline_mode = #tpu.pipeline_mode<synchronous>, transform_indices = @transform_5, window_bounds = array<i64: 1, 32>}, {transform_indices = @transform_6, window_bounds = array<i64: 16, 32>}]} {
    %c0_i32 = arith.constant 0 : i32
    %0 = arith.cmpi eq, %arg1, %c0_i32 : i32
    %1 = arith.extui %0 : i1 to i32
    %c0_i32_0 = arith.constant 0 : i32
    %2 = arith.cmpi ne, %1, %c0_i32_0 : i32
    scf.if %2 {
      %c0_10 = arith.constant 0 : index
      %c0_11 = arith.constant 0 : index
      %12 = vector.load %arg5[%c0_10, %c0_11] : memref<16x32xbf16, #tpu.memory_space<vmem>>, vector<16x32xbf16>
      %13 = arith.extf %12 : vector<16x32xbf16> to vector<16x32xf32>
      %c0_12 = arith.constant 0 : index
      %c0_13 = arith.constant 0 : index
      %14 = vector.load %arg4[%c0_12, %c0_13] : memref<1x32xbf16, #tpu.memory_space<vmem>>, vector<1x32xbf16>
      %15 = arith.extf %14 : vector<1x32xbf16> to vector<1x32xf32>
      %16 = vector.broadcast %15 : vector<1x32xf32> to vector<16x32xf32>
      %17 = arith.addf %13, %16 : vector<16x32xf32>
      %c0_14 = arith.constant 0 : index
      %c0_15 = arith.constant 0 : index
      %18 = vector.load %arg9[%c0_14, %c0_15] : memref<16x32xf32, #tpu.memory_space<vmem>>, vector<16x32xf32>
      tpu.vector_store %arg9[%c0_14, %c0_15], %17 {strides = array<i32>} : memref<16x32xf32, #tpu.memory_space<vmem>>, vector<16x32xf32>,
    } else {
    }
    %c0 = arith.constant 0 : index
    %c0_1 = arith.constant 0 : index
    %3 = vector.load %arg9[%c0, %c0_1] : memref<16x32xf32, #tpu.memory_space<vmem>>, vector<16x32xf32>
    %c0_2 = arith.constant 0 : index
    %c0_3 = arith.constant 0 : index
    %4 = vector.load %arg2[%c0_2, %c0_3] : memref<16x32xbf16, #tpu.memory_space<vmem>>, vector<16x32xbf16>
    %c0_4 = arith.constant 0 : index
    %c0_5 = arith.constant 0 : index
    %5 = vector.load %arg3[%c0_4, %c0_5] : memref<32x32xbf16, #tpu.memory_space<vmem>>, vector<32x32xbf16>
    %cst = arith.constant dense<0.000000e+00> : vector<16x32xf32>
    %6 = tpu.matmul %4, %5, %cst {dimension_numbers = #tpu.dot_dimension_numbers<[1], [0], [0], [1], [0, 0, 1, 1], [], []>} : vector<16x32xbf16>, vector<32x32xbf16>, vector<16x32xf32> -> vector<16x32xf32>
    %7 = arith.addf %3, %6 : vector<16x32xf32>
    %c0_6 = arith.constant 0 : index
    %c0_7 = arith.constant 0 : index
    %8 = vector.load %arg9[%c0_6, %c0_7] : memref<16x32xf32, #tpu.memory_space<vmem>>, vector<16x32xf32>
    tpu.vector_store %arg9[%c0_6, %c0_7], %7 {strides = array<i32>} : memref<16x32xf32, #tpu.memory_space<vmem>>, vector<16x32xf32>,
    %c0_i32_8 = arith.constant 0 : i32
    %9 = arith.cmpi eq, %arg1, %c0_i32_8 : i32
    %10 = arith.extui %9 : i1 to i32
    %c0_i32_9 = arith.constant 0 : i32
    %11 = arith.cmpi ne, %10, %c0_i32_9 : i32
    scf.if %11 {
      %c0_10 = arith.constant 0 : index
      %c0_11 = arith.constant 0 : index
      %12 = vector.load %arg9[%c0_10, %c0_11] : memref<16x32xf32, #tpu.memory_space<vmem>>, vector<16x32xf32>
      %cst_12 = arith.constant dense<0.000000e+00> : vector<16xf32>
      %13 = vector.multi_reduction <add>, %12, %cst_12 [1] : vector<16x32xf32> to vector<16xf32>
      %14 = vector.shape_cast %13 : vector<16xf32> to vector<16x1xf32>
      %cst_13 = arith.constant 3.200000e+01 : f32
      %15 = vector.broadcast %cst_13 : f32 to vector<16x1xf32>
      %16 = arith.divf %14, %15 : vector<16x1xf32>
      %17 = vector.broadcast %16 : vector<16x1xf32> to vector<16x32xf32>
      %18 = arith.subf %12, %17 : vector<16x32xf32>
      %19 = arith.mulf %18, %18 : vector<16x32xf32>
      %cst_14 = arith.constant dense<0.000000e+00> : vector<16xf32>
      %20 = vector.multi_reduction <add>, %19, %cst_14 [1] : vector<16x32xf32> to vector<16xf32>
      %21 = vector.shape_cast %20 : vector<16xf32> to vector<16x1xf32>
      %cst_15 = arith.constant 3.200000e+01 : f32
      %22 = vector.broadcast %cst_15 : f32 to vector<16x1xf32>
      %23 = arith.divf %21, %22 : vector<16x1xf32>
      %24 = vector.broadcast %16 : vector<16x1xf32> to vector<16x32xf32>
      %25 = arith.subf %12, %24 : vector<16x32xf32>
      %cst_16 = arith.constant 9.99999974E-6 : f32
      %26 = vector.broadcast %cst_16 : f32 to vector<16x1xf32>
      %27 = arith.addf %23, %26 : vector<16x1xf32>
      %28 = math.rsqrt %27 : vector<16x1xf32>
      %29 = vector.broadcast %28 : vector<16x1xf32> to vector<16x32xf32>
      %30 = arith.mulf %25, %29 : vector<16x32xf32>
      %c0_17 = arith.constant 0 : index
      %c0_18 = arith.constant 0 : index
      %31 = vector.load %arg6[%c0_17, %c0_18] : memref<1x32xbf16, #tpu.memory_space<vmem>>, vector<1x32xbf16>
      %32 = arith.extf %31 : vector<1x32xbf16> to vector<1x32xf32>
      %33 = vector.broadcast %32 : vector<1x32xf32> to vector<16x32xf32>
      %34 = arith.mulf %30, %33 : vector<16x32xf32>
      %c0_19 = arith.constant 0 : index
      %c0_20 = arith.constant 0 : index
      %35 = vector.load %arg7[%c0_19, %c0_20] : memref<1x32xbf16, #tpu.memory_space<vmem>>, vector<1x32xbf16>
      %36 = arith.extf %35 : vector<1x32xbf16> to vector<1x32xf32>
      %37 = vector.broadcast %36 : vector<1x32xf32> to vector<16x32xf32>
      %38 = arith.addf %34, %37 : vector<16x32xf32>
      %39 = arith.truncf %38 : vector<16x32xf32> to vector<16x32xbf16>
      %c0_21 = arith.constant 0 : index
      %c0_22 = arith.constant 0 : index
      %40 = vector.load %arg8[%c0_21, %c0_22] : memref<16x32xbf16, #tpu.memory_space<vmem>>, vector<16x32xbf16>
      tpu.vector_store %arg8[%c0_21, %c0_22], %39 {strides = array<i32>} : memref<16x32xbf16, #tpu.memory_space<vmem>>, vector<16x32xbf16>,
    } else {
    }
    return
  }
  func.func @transform_0(%arg0: i32, %arg1: i32) -> (i32, i32) {
    %c0_i32 = arith.constant 0 : i32
    return %arg0, %arg1 : i32, i32
  }
  func.func @transform_1(%arg0: i32, %arg1: i32) -> (i32, i32) {
    %c0_i32 = arith.constant 0 : i32
    %c0_i32_0 = arith.constant 0 : i32
    return %arg1, %c0_i32 : i32, i32
  }
  func.func @transform_2(%arg0: i32, %arg1: i32) -> (i32, i32) {
    %c0_i32 = arith.constant 0 : i32
    %c0_i32_0 = arith.constant 0 : i32
    %c0_i32_1 = arith.constant 0 : i32
    return %c0_i32, %c0_i32_0 : i32, i32
  }
  func.func @transform_3(%arg0: i32, %arg1: i32) -> (i32, i32) {
    %c0_i32 = arith.constant 0 : i32
    %c0_i32_0 = arith.constant 0 : i32
    return %arg0, %c0_i32 : i32, i32
  }
  func.func @transform_4(%arg0: i32, %arg1: i32) -> (i32, i32) {
    %c0_i32 = arith.constant 0 : i32
    %c0_i32_0 = arith.constant 0 : i32
    %c0_i32_1 = arith.constant 0 : i32
    return %c0_i32, %c0_i32_0 : i32, i32
  }
  func.func @transform_5(%arg0: i32, %arg1: i32) -> (i32, i32) {
    %c0_i32 = arith.constant 0 : i32
    %c0_i32_0 = arith.constant 0 : i32
    %c0_i32_1 = arith.constant 0 : i32
    return %c0_i32, %c0_i32_0 : i32, i32
  }
  func.func @transform_6(%arg0: i32, %arg1: i32) -> (i32, i32) {
    %c0_i32 = arith.constant 0 : i32
    %c0_i32_0 = arith.constant 0 : i32
    return %arg0, %c0_i32 : i32, i32
  }
}

module attributes {stable_mosaic.version = 11 : i64} {
  func.func @_ffn_ln_kernel(%arg0: i32, %arg1: i32, %arg2: memref<16x32xbf16, #tpu.memory_space<vmem>>, %arg3: memref<32x32xbf16, #tpu.memory_space<vmem>>, %arg4: memref<1x32xbf16, #tpu.memory_space<vmem>>, %arg5: memref<32x32xbf16, #tpu.memory_space<vmem>>, %arg6: memref<1x32xbf16, #tpu.memory_space<vmem>>, %arg7: memref<1x32xbf16, #tpu.memory_space<vmem>>, %arg8: memref<1x32xbf16, #tpu.memory_space<vmem>>, %arg9: memref<16x32xbf16, #tpu.memory_space<vmem>>, %arg10: memref<16x32xf32, #tpu.memory_space<vmem>>) attributes {dimension_semantics = [#tpu.dimension_semantics<parallel>, #tpu.dimension_semantics<arbitrary>], iteration_bounds = array<i64: 1, 1>, scalar_prefetch = 0 : i64, scratch_operands = 1 : i64, tpu.core_type = #tpu.core_type<tc>, window_params = [{transform_indices = @transform_0, window_bounds = array<i64: 16, 32>}, {transform_indices = @transform_1, window_bounds = array<i64: 32, 32>}, {transform_indices = @transform_2, window_bounds = array<i64: 1, 32>}, {transform_indices = @transform_3, window_bounds = array<i64: 32, 32>}, {pipeline_mode = #tpu.pipeline_mode<synchronous>, transform_indices = @transform_4, window_bounds = array<i64: 1, 32>}, {pipeline_mode = #tpu.pipeline_mode<synchronous>, transform_indices = @transform_5, window_bounds = array<i64: 1, 32>}, {pipeline_mode = #tpu.pipeline_mode<synchronous>, transform_indices = @transform_6, window_bounds = array<i64: 1, 32>}, {transform_indices = @transform_7, window_bounds = array<i64: 16, 32>}]} {
    %c0 = arith.constant 0 : index
    %c0_0 = arith.constant 0 : index
    %0 = vector.load %arg2[%c0, %c0_0] : memref<16x32xbf16, #tpu.memory_space<vmem>>, vector<16x32xbf16>
    %c0_i32 = arith.constant 0 : i32
    %1 = arith.cmpi eq, %arg1, %c0_i32 : i32
    %2 = arith.extui %1 : i1 to i32
    %c0_i32_1 = arith.constant 0 : i32
    %3 = arith.cmpi ne, %2, %c0_i32_1 : i32
    scf.if %3 {
      %21 = arith.extf %0 : vector<16x32xbf16> to vector<16x32xf32>
      %c0_16 = arith.constant 0 : index
      %c0_17 = arith.constant 0 : index
      %22 = vector.load %arg6[%c0_16, %c0_17] : memref<1x32xbf16, #tpu.memory_space<vmem>>, vector<1x32xbf16>
      %23 = arith.extf %22 : vector<1x32xbf16> to vector<1x32xf32>
      %24 = vector.broadcast %23 : vector<1x32xf32> to vector<16x32xf32>
      %25 = arith.addf %21, %24 : vector<16x32xf32>
      %c0_18 = arith.constant 0 : index
      %c0_19 = arith.constant 0 : index
      %26 = vector.load %arg10[%c0_18, %c0_19] : memref<16x32xf32, #tpu.memory_space<vmem>>, vector<16x32xf32>
      tpu.vector_store %arg10[%c0_18, %c0_19], %25 {strides = array<i32>} : memref<16x32xf32, #tpu.memory_space<vmem>>, vector<16x32xf32>,
    } else {
    }
    %c0_2 = arith.constant 0 : index
    %c0_3 = arith.constant 0 : index
    %4 = vector.load %arg3[%c0_2, %c0_3] : memref<32x32xbf16, #tpu.memory_space<vmem>>, vector<32x32xbf16>
    %cst = arith.constant dense<0.000000e+00> : vector<16x32xf32>
    %5 = tpu.matmul %0, %4, %cst {dimension_numbers = #tpu.dot_dimension_numbers<[1], [0], [0], [1], [0, 0, 1, 1], [], []>} : vector<16x32xbf16>, vector<32x32xbf16>, vector<16x32xf32> -> vector<16x32xf32>
    %c0_4 = arith.constant 0 : index
    %c0_5 = arith.constant 0 : index
    %6 = vector.load %arg4[%c0_4, %c0_5] : memref<1x32xbf16, #tpu.memory_space<vmem>>, vector<1x32xbf16>
    %7 = arith.extf %6 : vector<1x32xbf16> to vector<1x32xf32>
    %8 = vector.broadcast %7 : vector<1x32xf32> to vector<16x32xf32>
    %9 = arith.addf %5, %8 : vector<16x32xf32>
    %cst_6 = arith.constant 0.000000e+00 : f32
    %10 = vector.broadcast %cst_6 : f32 to vector<16x32xf32>
    %11 = arith.maximumf %9, %10 : vector<16x32xf32>
    %c0_7 = arith.constant 0 : index
    %c0_8 = arith.constant 0 : index
    %12 = vector.load %arg10[%c0_7, %c0_8] : memref<16x32xf32, #tpu.memory_space<vmem>>, vector<16x32xf32>
    %13 = arith.truncf %11 : vector<16x32xf32> to vector<16x32xbf16>
    %c0_9 = arith.constant 0 : index
    %c0_10 = arith.constant 0 : index
    %14 = vector.load %arg5[%c0_9, %c0_10] : memref<32x32xbf16, #tpu.memory_space<vmem>>, vector<32x32xbf16>
    %cst_11 = arith.constant dense<0.000000e+00> : vector<16x32xf32>
    %15 = tpu.matmul %13, %14, %cst_11 {dimension_numbers = #tpu.dot_dimension_numbers<[1], [0], [0], [1], [0, 0, 1, 1], [], []>} : vector<16x32xbf16>, vector<32x32xbf16>, vector<16x32xf32> -> vector<16x32xf32>
    %16 = arith.addf %12, %15 : vector<16x32xf32>
    %c0_12 = arith.constant 0 : index
    %c0_13 = arith.constant 0 : index
    %17 = vector.load %arg10[%c0_12, %c0_13] : memref<16x32xf32, #tpu.memory_space<vmem>>, vector<16x32xf32>
    tpu.vector_store %arg10[%c0_12, %c0_13], %16 {strides = array<i32>} : memref<16x32xf32, #tpu.memory_space<vmem>>, vector<16x32xf32>,
    %c0_i32_14 = arith.constant 0 : i32
    %18 = arith.cmpi eq, %arg1, %c0_i32_14 : i32
    %19 = arith.extui %18 : i1 to i32
    %c0_i32_15 = arith.constant 0 : i32
    %20 = arith.cmpi ne, %19, %c0_i32_15 : i32
    scf.if %20 {
      %c0_16 = arith.constant 0 : index
      %c0_17 = arith.constant 0 : index
      %21 = vector.load %arg10[%c0_16, %c0_17] : memref<16x32xf32, #tpu.memory_space<vmem>>, vector<16x32xf32>
      %cst_18 = arith.constant dense<0.000000e+00> : vector<16xf32>
      %22 = vector.multi_reduction <add>, %21, %cst_18 [1] : vector<16x32xf32> to vector<16xf32>
      %23 = vector.shape_cast %22 : vector<16xf32> to vector<16x1xf32>
      %cst_19 = arith.constant 3.200000e+01 : f32
      %24 = vector.broadcast %cst_19 : f32 to vector<16x1xf32>
      %25 = arith.divf %23, %24 : vector<16x1xf32>
      %26 = vector.broadcast %25 : vector<16x1xf32> to vector<16x32xf32>
      %27 = arith.subf %21, %26 : vector<16x32xf32>
      %28 = arith.mulf %27, %27 : vector<16x32xf32>
      %cst_20 = arith.constant dense<0.000000e+00> : vector<16xf32>
      %29 = vector.multi_reduction <add>, %28, %cst_20 [1] : vector<16x32xf32> to vector<16xf32>
      %30 = vector.shape_cast %29 : vector<16xf32> to vector<16x1xf32>
      %cst_21 = arith.constant 3.200000e+01 : f32
      %31 = vector.broadcast %cst_21 : f32 to vector<16x1xf32>
      %32 = arith.divf %30, %31 : vector<16x1xf32>
      %33 = vector.broadcast %25 : vector<16x1xf32> to vector<16x32xf32>
      %34 = arith.subf %21, %33 : vector<16x32xf32>
      %cst_22 = arith.constant 9.99999974E-6 : f32
      %35 = vector.broadcast %cst_22 : f32 to vector<16x1xf32>
      %36 = arith.addf %32, %35 : vector<16x1xf32>
      %37 = math.rsqrt %36 : vector<16x1xf32>
      %38 = vector.broadcast %37 : vector<16x1xf32> to vector<16x32xf32>
      %39 = arith.mulf %34, %38 : vector<16x32xf32>
      %c0_23 = arith.constant 0 : index
      %c0_24 = arith.constant 0 : index
      %40 = vector.load %arg7[%c0_23, %c0_24] : memref<1x32xbf16, #tpu.memory_space<vmem>>, vector<1x32xbf16>
      %41 = arith.extf %40 : vector<1x32xbf16> to vector<1x32xf32>
      %42 = vector.broadcast %41 : vector<1x32xf32> to vector<16x32xf32>
      %43 = arith.mulf %39, %42 : vector<16x32xf32>
      %c0_25 = arith.constant 0 : index
      %c0_26 = arith.constant 0 : index
      %44 = vector.load %arg8[%c0_25, %c0_26] : memref<1x32xbf16, #tpu.memory_space<vmem>>, vector<1x32xbf16>
      %45 = arith.extf %44 : vector<1x32xbf16> to vector<1x32xf32>
      %46 = vector.broadcast %45 : vector<1x32xf32> to vector<16x32xf32>
      %47 = arith.addf %43, %46 : vector<16x32xf32>
      %48 = arith.truncf %47 : vector<16x32xf32> to vector<16x32xbf16>
      %c0_27 = arith.constant 0 : index
      %c0_28 = arith.constant 0 : index
      %49 = vector.load %arg9[%c0_27, %c0_28] : memref<16x32xbf16, #tpu.memory_space<vmem>>, vector<16x32xbf16>
      tpu.vector_store %arg9[%c0_27, %c0_28], %48 {strides = array<i32>} : memref<16x32xbf16, #tpu.memory_space<vmem>>, vector<16x32xbf16>,
    } else {
    }
    return
  }
  func.func @transform_0(%arg0: i32, %arg1: i32) -> (i32, i32) {
    %c0_i32 = arith.constant 0 : i32
    %c0_i32_0 = arith.constant 0 : i32
    return %arg0, %c0_i32 : i32, i32
  }
  func.func @transform_1(%arg0: i32, %arg1: i32) -> (i32, i32) {
    %c0_i32 = arith.constant 0 : i32
    %c0_i32_0 = arith.constant 0 : i32
    return %c0_i32, %arg1 : i32, i32
  }
  func.func @transform_2(%arg0: i32, %arg1: i32) -> (i32, i32) {
    %c0_i32 = arith.constant 0 : i32
    %c0_i32_0 = arith.constant 0 : i32
    return %c0_i32, %arg1 : i32, i32
  }
  func.func @transform_3(%arg0: i32, %arg1: i32) -> (i32, i32) {
    %c0_i32 = arith.constant 0 : i32
    %c0_i32_0 = arith.constant 0 : i32
    return %arg1, %c0_i32 : i32, i32
  }
  func.func @transform_4(%arg0: i32, %arg1: i32) -> (i32, i32) {
    %c0_i32 = arith.constant 0 : i32
    %c0_i32_0 = arith.constant 0 : i32
    %c0_i32_1 = arith.constant 0 : i32
    return %c0_i32, %c0_i32_0 : i32, i32
  }
  func.func @transform_5(%arg0: i32, %arg1: i32) -> (i32, i32) {
    %c0_i32 = arith.constant 0 : i32
    %c0_i32_0 = arith.constant 0 : i32
    %c0_i32_1 = arith.constant 0 : i32
    return %c0_i32, %c0_i32_0 : i32, i32
  }
  func.func @transform_6(%arg0: i32, %arg1: i32) -> (i32, i32) {
    %c0_i32 = arith.constant 0 : i32
    %c0_i32_0 = arith.constant 0 : i32
    %c0_i32_1 = arith.constant 0 : i32
    return %c0_i32, %c0_i32_0 : i32, i32
  }
  func.func @transform_7(%arg0: i32, %arg1: i32) -> (i32, i32) {
    %c0_i32 = arith.constant 0 : i32
    %c0_i32_0 = arith.constant 0 : i32
    return %arg0, %c0_i32 : i32, i32
  }
}

</mosaic_0001>

<llo_original>
// kernel: transformer_encoder.8
$region0: #{transformer_encoder.8}
  #allocation0 [shape = 'u32[]', space=smem, size = 0x4, offset = 0x4, fixed_abs, tag = 'smem constant byte address 0x4 - core index']
  #allocation1 [shape = 'u32[144,128]{1,0:T(1,128)}', space=vmem, size = 0x12000, scoped, tag = 'internal scratch']
  #allocation2 [shape = 'f32[16,96]{1,0:T(8,128)}', space=vmem, size = 0x2000, scoped, tag = 'scratch operand']
  %s0 = inlined_call_operand.vmem [shape: bf16[16,32], index: 0, kind: input, shape index: {}]
  %s1 = inlined_call_operand.vmem [shape: bf16[32,96], index: 1, kind: input, shape index: {}]
  %s2 = inlined_call_operand.vmem [shape: bf16[1,96], index: 2, kind: input, shape index: {}]
  %s3 = inlined_call_operand.vmem [shape: bf16[16,96], index: 3, kind: output, shape index: {}]
  %s4 = sld [smem:[#allocation0]]
  $region30: #{transformer_encoder.8} parent=0
    _
  %s6 = ssub.s32 1, %s4
  %s7 = scalar_select 0, %s6, %s4
  // Predicated region
  $region2: #{transformer_encoder.8} parent=0 // pred_check
    _
  $region3: #{transformer_encoder.8} parent=0 // pred_check_branch
    %9 = sbr.rel (0) target = $region5
  $region4: #{transformer_encoder.8} parent=0 // pred_region
    _
  $region5: #{transformer_encoder.8} parent=0 // pred_fallthru
    _
  // Predicated region
  $region6: #{transformer_encoder.8} parent=0 // pred_check
    _
  $region7: #{transformer_encoder.8} parent=0 // pred_check_branch
    %11 = sbr.rel (0) target = $region9
  $region8: #{transformer_encoder.8} parent=0 // pred_region
    _
  $region9: #{transformer_encoder.8} parent=0 // pred_fallthru
    _
  // Predicated region
  $region10: #{transformer_encoder.8} parent=0 // pred_check
    _
  $region11: #{transformer_encoder.8} parent=0 // pred_check_branch
    %13 = sbr.rel (0) target = $region13
  $region12: #{transformer_encoder.8} parent=0 // pred_region
    _
  $region13: #{transformer_encoder.8} parent=0 // pred_fallthru
    _
  %p15 = scmp.eq.s32.totalorder 0, 0
  // Predicated region
  $region14: #{transformer_encoder.8} parent=0 // pred_check
    %p16 = pneg %p15
  $region15: #{transformer_encoder.8} parent=0 // pred_check_branch
    %18 = sbr.rel (%p16) target = $region17
  $region16: #{transformer_encoder.8} parent=0 // pred_region
    %vm19 = vcmask 785408
    %20 = vst.msk [vmem:[#allocation2] sm:$0xff] %vm19, 0.0
    %21 = vst.msk [vmem:[#allocation2 + $0x8] sm:$0xff] %vm19, 0.0
  $region17: #{transformer_encoder.8} parent=0 // pred_fallthru
    _
  %v22 = vld [vmem:[#allocation2] sm:$0xff]
  %v23 = vld [vmem:[#allocation2 + $0x8] sm:$0xff]
  %v24 = vld [vmem:[%s0] sm:$0xf]
  %v25 = vld [vmem:[%s0 + $0x4] sm:$0xf]
  %v26 = vld [vmem:[%s1] sm:$0xf]
  %v27 = vld [vmem:[%s1 + $0x4] sm:$0xf]
  %v28 = vld [vmem:[%s1 + $0x8] sm:$0xf]
  %v29 = vld [vmem:[%s1 + $0xc] sm:$0xf]
  %v32 = vunpack.c.l.b16 %v24
  %v33 = vunpack.c.l.b16 %v25
  %v34 = vpack.c.b16 %v33, %v32
  %v39 = vunpack.c.l.b16 %v26
  %v40 = vunpack.c.l.b16 %v27
  %v41 = vunpack.c.l.b16 %v28
  %v42 = vunpack.c.l.b16 %v29
  %v43 = vpack.c.b16 %v40, %v39
  %v44 = vpack.c.b16 %v42, %v41
  %vm47 = vcmask 261120
  %v49 = vsel %vm47, %v34, 0
  %51 = vmatprep.subr.bf16.mxu0 0
  %52 = vmatpush1.bf16.msra.mxu0 %v43
  %53 = vmatprep.subr.bf16.mxu0 0
  %54 = vmatpush1.bf16.msra.mxu0 %v44
  %55 = vmatprep.subr.bf16.mxu0 0
  %56 = vmatpush1.bf16.msra.mxu0 0
  %57 = vmatprep.subr.bf16.mxu0 0
  %58 = vmatpush1.bf16.msra.mxu0 0
  %59 = vmatprep.subr.bf16.mxu0 0
  %60 = vmatpush1.bf16.msra.mxu0 0
  %61 = vmatprep.subr.bf16.mxu0 0
  %62 = vmatpush1.bf16.msra.mxu0 0
  %63 = vmatprep.subr.bf16.mxu0 0
  %64 = vmatpush1.bf16.msra.mxu0 0
  %65 = vmatprep.subr.bf16.mxu0 0
  %66 = vmatpush1.bf16.msra.mxu0 0
  %67 = vmatprep.subr.bf16.mxu0 0
  %68 = vmatpush1.bf16.msra.mxu0 0
  %69 = vmatprep.subr.bf16.mxu0 0
  %70 = vmatpush1.bf16.msra.mxu0 0
  %71 = vmatprep.subr.bf16.mxu0 0
  %72 = vmatpush1.bf16.msra.mxu0 0
  %73 = vmatprep.subr.bf16.mxu0 0
  %74 = vmatpush1.bf16.msra.mxu0 0
  %75 = vmatprep.subr.bf16.mxu0 0
  %76 = vmatpush1.bf16.msra.mxu0 0
  %77 = vmatprep.subr.bf16.mxu0 0
  %78 = vmatpush1.bf16.msra.mxu0 0
  %79 = vmatprep.subr.bf16.mxu0 0
  %80 = vmatpush1.bf16.msra.mxu0 0
  %81 = vmatprep.subr.bf16.mxu0 0
  %82 = vmatpush1.bf16.msra.mxu0 0
  %83 = vmatprep.mubr.bf16.mxu0 0
  %84 = vmatmul.mubr.bf16.gmra.mrb[0].mxu0 %v49
  %v85 = vpop.f32.mrb[0].mxu0
  %v86 = vadd.f32 0.0, %v85
  %v87 = vpop.f32.mrb[0].mxu0
  %v88 = vpop.f32.mrb[0].mxu0
  %v89 = vadd.f32 0.0, %v88
  %v90 = vpop.f32.mrb[0].mxu0
  %91 = vdwg.mxu0
  %v92 = vadd.f32 %v22, %v86
  %v93 = vadd.f32 %v23, %v89
  %vm94 = vcmask 785408
  %95 = vst.msk [vmem:[#allocation2] sm:$0xff] %vm94, %v92
  %96 = vst.msk [vmem:[#allocation2 + $0x8] sm:$0xff] %vm94, %v93
  // Predicated region
  $region18: #{transformer_encoder.8} parent=0 // pred_check
    %p97 = pneg %p15
  $region19: #{transformer_encoder.8} parent=0 // pred_check_branch
    %99 = sbr.rel (%p97) target = $region21
  $region20: #{transformer_encoder.8} parent=0 // pred_region
    %v100 = vld [vmem:[#allocation2] sm:$0xff]
    %v101 = vld [vmem:[#allocation2 + $0x8] sm:$0xff]
    %v102 = vld [vmem:[%s2] sm:$0x1]
    %v103 = vunpack.c.l.bf16 %v102
    %v104 = vlaneseq
    %v105 = vshrl.u32 %v104, 7
    %v106 = vsub.s32 0, %v105
    %v107 = vrot.slane %v103, %v106
    %v108 = vadd.f32 %v100, %v107
    %v109 = vadd.f32 %v101, %v107
    %v110 = vpack.c.bf16 %v109, %v108
    %v112 = vunpack.c.l.b16 %v110
    %v113 = vunpack.c.h.b16 %v110
    %v114 = vpack.c.b16 %v112, %v112
    %v115 = vpack.c.b16 %v113, %v113
    %vm118 = vcmask 781312
    %119 = vst.msk [vmem:[%s3] sm:$0xf] %vm118, %v114
    %120 = vst.msk [vmem:[%s3 + $0x4] sm:$0xf] %vm118, %v115
  $region21: #{transformer_encoder.8} parent=0 // pred_fallthru
    _
  // Predicated region
  $region22: #{transformer_encoder.8} parent=0 // pred_check
    _
  $region23: #{transformer_encoder.8} parent=0 // pred_check_branch
    %122 = sbr.rel (0) target = $region25
  $region24: #{transformer_encoder.8} parent=0 // pred_region
    _
  $region25: #{transformer_encoder.8} parent=0 // pred_fallthru
    _
  // Predicated region
  $region26: #{transformer_encoder.8} parent=0 // pred_check
    _
  $region27: #{transformer_encoder.8} parent=0 // pred_check_branch
    %124 = sbr.rel (0) target = $region29
  $region28: #{transformer_encoder.8} parent=0 // pred_region
    _
  $region29: #{transformer_encoder.8} parent=0 // pred_fallthru
    _

// kernel: transformer_encoder.11
$region0: #{transformer_encoder.11}
  #allocation0 [shape = 'u32[]', space=smem, size = 0x4, offset = 0x4, fixed_abs, tag = 'smem constant byte address 0x4 - core index']
  #allocation1 [shape = 'u32[144,128]{1,0:T(1,128)}', space=vmem, size = 0x12000, scoped, tag = 'internal scratch']
  #allocation2 [shape = 'f32[16,32]{1,0:T(8,128)}', space=vmem, size = 0x2000, scoped, tag = 'scratch operand']
  %s0 = inlined_call_operand.vmem [shape: bf16[16,32], index: 0, kind: input, shape index: {}]
  %s1 = inlined_call_operand.vmem [shape: bf16[32,32], index: 1, kind: input, shape index: {}]
  %s2 = inlined_call_operand.vmem [shape: bf16[1,32], index: 2, kind: input, shape index: {}]
  %s3 = inlined_call_operand.vmem [shape: bf16[32,32], index: 3, kind: input, shape index: {}]
  %s4 = inlined_call_operand.vmem [shape: bf16[1,32], index: 4, kind: input, shape index: {}]
  %s5 = inlined_call_operand.vmem [shape: bf16[1,32], index: 5, kind: input, shape index: {}]
  %s6 = inlined_call_operand.vmem [shape: bf16[1,32], index: 6, kind: input, shape index: {}]
  %s7 = inlined_call_operand.vmem [shape: bf16[16,32], index: 7, kind: output, shape index: {}]
  %s8 = sld [smem:[#allocation0]]
  $region46: #{transformer_encoder.11} parent=0
    _
  %s10 = ssub.s32 1, %s8
  %s11 = scalar_select 0, %s10, %s8
  // Predicated region
  $region2: #{transformer_encoder.11} parent=0 // pred_check
    _
  $region3: #{transformer_encoder.11} parent=0 // pred_check_branch
    %13 = sbr.rel (0) target = $region5
  $region4: #{transformer_encoder.11} parent=0 // pred_region
    _
  $region5: #{transformer_encoder.11} parent=0 // pred_fallthru
    _
  // Predicated region
  $region6: #{transformer_encoder.11} parent=0 // pred_check
    _
  $region7: #{transformer_encoder.11} parent=0 // pred_check_branch
    %15 = sbr.rel (0) target = $region9
  $region8: #{transformer_encoder.11} parent=0 // pred_region
    _
  $region9: #{transformer_encoder.11} parent=0 // pred_fallthru
    _
  // Predicated region
  $region10: #{transformer_encoder.11} parent=0 // pred_check
    _
  $region11: #{transformer_encoder.11} parent=0 // pred_check_branch
    %17 = sbr.rel (0) target = $region13
  $region12: #{transformer_encoder.11} parent=0 // pred_region
    _
  $region13: #{transformer_encoder.11} parent=0 // pred_fallthru
    _
  // Predicated region
  $region14: #{transformer_encoder.11} parent=0 // pred_check
    _
  $region15: #{transformer_encoder.11} parent=0 // pred_check_branch
    %19 = sbr.rel (0) target = $region17
  $region16: #{transformer_encoder.11} parent=0 // pred_region
    _
  $region17: #{transformer_encoder.11} parent=0 // pred_fallthru
    _
  // Predicated region
  $region18: #{transformer_encoder.11} parent=0 // pred_check
    _
  $region19: #{transformer_encoder.11} parent=0 // pred_check_branch
    %21 = sbr.rel (0) target = $region21
  $region20: #{transformer_encoder.11} parent=0 // pred_region
    _
  $region21: #{transformer_encoder.11} parent=0 // pred_fallthru
    _
  // Predicated region
  $region22: #{transformer_encoder.11} parent=0 // pred_check
    _
  $region23: #{transformer_encoder.11} parent=0 // pred_check_branch
    %23 = sbr.rel (0) target = $region25
  $region24: #{transformer_encoder.11} parent=0 // pred_region
    _
  $region25: #{transformer_encoder.11} parent=0 // pred_fallthru
    _
  // Predicated region
  $region26: #{transformer_encoder.11} parent=0 // pred_check
    _
  $region27: #{transformer_encoder.11} parent=0 // pred_check_branch
    %25 = sbr.rel (0) target = $region29
  $region28: #{transformer_encoder.11} parent=0 // pred_region
    _
  $region29: #{transformer_encoder.11} parent=0 // pred_fallthru
    _
  %v27 = vld [vmem:[%s0] sm:$0xf]
  %v28 = vld [vmem:[%s0 + $0x4] sm:$0xf]
  %p29 = scmp.eq.s32.totalorder 0, 0
  // Predicated region
  $region30: #{transformer_encoder.11} parent=0 // pred_check
    %p30 = pneg %p29
  $region31: #{transformer_encoder.11} parent=0 // pred_check_branch
    %32 = sbr.rel (%p30) target = $region33
  $region32: #{transformer_encoder.11} parent=0 // pred_region
    %v33 = vunpack.c.l.bf16 %v27
    %v34 = vunpack.c.l.bf16 %v28
    %v35 = vld [vmem:[%s4] sm:$0x1]
    %v36 = vunpack.c.l.bf16 %v35
    %v37 = vlaneseq
    %v38 = vshrl.u32 %v37, 7
    %v39 = vsub.s32 0, %v38
    %v40 = vrot.slane %v36, %v39
    %v41 = vadd.f32 %v33, %v40
    %v42 = vadd.f32 %v34, %v40
    %vm43 = vcmask 261120
    %44 = vst.msk [vmem:[#allocation2] sm:$0xff] %vm43, %v41
    %45 = vst.msk [vmem:[#allocation2 + $0x8] sm:$0xff] %vm43, %v42
  $region33: #{transformer_encoder.11} parent=0 // pred_fallthru
    _
  %v46 = vld [vmem:[%s1] sm:$0xf]
  %v47 = vld [vmem:[%s1 + $0x4] sm:$0xf]
  %v48 = vld [vmem:[%s1 + $0x8] sm:$0xf]
  %v49 = vld [vmem:[%s1 + $0xc] sm:$0xf]
  %v50 = vld [vmem:[%s2] sm:$0x1]
  %v51 = vunpack.c.l.bf16 %v50
  %v52 = vlaneseq
  %v53 = vshrl.u32 %v52, 7
  %v54 = vsub.s32 0, %v53
  %v55 = vrot.slane %v51, %v54
  %v58 = vunpack.c.l.b16 %v27
  %v59 = vunpack.c.l.b16 %v28
  %v60 = vpack.c.b16 %v59, %v58
  %v65 = vunpack.c.l.b16 %v46
  %v66 = vunpack.c.l.b16 %v47
  %v67 = vunpack.c.l.b16 %v48
  %v68 = vunpack.c.l.b16 %v49
  %v69 = vpack.c.b16 %v66, %v65
  %v70 = vpack.c.b16 %v68, %v67
  %vm73 = vcmask 261120
  %v75 = vsel %vm73, %v60, 0
  %77 = vmatprep.subr.bf16.mxu0 0
  %78 = vmatpush1.bf16.msra.mxu0 %v69
  %79 = vmatprep.subr.bf16.mxu0 0
  %80 = vmatpush1.bf16.msra.mxu0 %v70
  %81 = vmatprep.subr.bf16.mxu0 0
  %82 = vmatpush1.bf16.msra.mxu0 0
  %83 = vmatprep.subr.bf16.mxu0 0
  %84 = vmatpush1.bf16.msra.mxu0 0
  %85 = vmatprep.subr.bf16.mxu0 0
  %86 = vmatpush1.bf16.msra.mxu0 0
  %87 = vmatprep.subr.bf16.mxu0 0
  %88 = vmatpush1.bf16.msra.mxu0 0
  %89 = vmatprep.subr.bf16.mxu0 0
  %90 = vmatpush1.bf16.msra.mxu0 0
  %91 = vmatprep.subr.bf16.mxu0 0
  %92 = vmatpush1.bf16.msra.mxu0 0
  %93 = vmatprep.subr.bf16.mxu0 0
  %94 = vmatpush1.bf16.msra.mxu0 0
  %95 = vmatprep.subr.bf16.mxu0 0
  %96 = vmatpush1.bf16.msra.mxu0 0
  %97 = vmatprep.subr.bf16.mxu0 0
  %98 = vmatpush1.bf16.msra.mxu0 0
  %99 = vmatprep.subr.bf16.mxu0 0
  %100 = vmatpush1.bf16.msra.mxu0 0
  %101 = vmatprep.subr.bf16.mxu0 0
  %102 = vmatpush1.bf16.msra.mxu0 0
  %103 = vmatprep.subr.bf16.mxu0 0
  %104 = vmatpush1.bf16.msra.mxu0 0
  %105 = vmatprep.subr.bf16.mxu0 0
  %106 = vmatpush1.bf16.msra.mxu0 0
  %107 = vmatprep.subr.bf16.mxu0 0
  %108 = vmatpush1.bf16.msra.mxu0 0
  %109 = vmatprep.mubr.bf16.mxu0 0
  %110 = vmatmul.mubr.bf16.gmra.mrb[0].mxu0 %v75
  %v111 = vpop.f32.mrb[0].mxu0
  %v112 = vadd.f32 %v55, %v111
  %v113 = vpop.f32.mrb[0].mxu0
  %v114 = vpop.f32.mrb[0].mxu0
  %v115 = vadd.f32 %v55, %v114
  %v116 = vpop.f32.mrb[0].mxu0
  %117 = vdwg.mxu0
  %v118 = vmax.f32 %v112, 0.0
  %v119 = vmax.f32 %v115, 0.0
  %v120 = vld [vmem:[#allocation2] sm:$0xff]
  %v121 = vld [vmem:[#allocation2 + $0x8] sm:$0xff]
  %v122 = vpack.c.bf16 %v119, %v118
  %v123 = vld [vmem:[%s3] sm:$0xf]
  %v124 = vld [vmem:[%s3 + $0x4] sm:$0xf]
  %v125 = vld [vmem:[%s3 + $0x8] sm:$0xf]
  %v126 = vld [vmem:[%s3 + $0xc] sm:$0xf]
  %v131 = vunpack.c.l.b16 %v123
  %v132 = vunpack.c.l.b16 %v124
  %v133 = vunpack.c.l.b16 %v125
  %v134 = vunpack.c.l.b16 %v126
  %v135 = vpack.c.b16 %v132, %v131
  %v136 = vpack.c.b16 %v134, %v133
  %v140 = vsel %vm73, %v122, 0
  %142 = vmatprep.subr.bf16.mxu0 0
  %143 = vmatpush1.bf16.msra.mxu0 %v135
  %144 = vmatprep.subr.bf16.mxu0 0
  %145 = vmatpush1.bf16.msra.mxu0 %v136
  %146 = vmatprep.subr.bf16.mxu0 0
  %147 = vmatpush1.bf16.msra.mxu0 0
  %148 = vmatprep.subr.bf16.mxu0 0
  %149 = vmatpush1.bf16.msra.mxu0 0
  %150 = vmatprep.subr.bf16.mxu0 0
  %151 = vmatpush1.bf16.msra.mxu0 0
  %152 = vmatprep.subr.bf16.mxu0 0
  %153 = vmatpush1.bf16.msra.mxu0 0
  %154 = vmatprep.subr.bf16.mxu0 0
  %155 = vmatpush1.bf16.msra.mxu0 0
  %156 = vmatprep.subr.bf16.mxu0 0
  %157 = vmatpush1.bf16.msra.mxu0 0
  %158 = vmatprep.subr.bf16.mxu0 0
  %159 = vmatpush1.bf16.msra.mxu0 0
  %160 = vmatprep.subr.bf16.mxu0 0
  %161 = vmatpush1.bf16.msra.mxu0 0
  %162 = vmatprep.subr.bf16.mxu0 0
  %163 = vmatpush1.bf16.msra.mxu0 0
  %164 = vmatprep.subr.bf16.mxu0 0
  %165 = vmatpush1.bf16.msra.mxu0 0
  %166 = vmatprep.subr.bf16.mxu0 0
  %167 = vmatpush1.bf16.msra.mxu0 0
  %168 = vmatprep.subr.bf16.mxu0 0
  %169 = vmatpush1.bf16.msra.mxu0 0
  %170 = vmatprep.subr.bf16.mxu0 0
  %171 = vmatpush1.bf16.msra.mxu0 0
  %172 = vmatprep.subr.bf16.mxu0 0
  %173 = vmatpush1.bf16.msra.mxu0 0
  %174 = vmatprep.mubr.bf16.mxu0 0
  %175 = vmatmul.mubr.bf16.gmra.mrb[0].mxu0 %v140
  %v176 = vpop.f32.mrb[0].mxu0
  %v177 = vadd.f32 0.0, %v176
  %v178 = vpop.f32.mrb[0].mxu0
  %v179 = vpop.f32.mrb[0].mxu0
  %v180 = vadd.f32 0.0, %v179
  %v181 = vpop.f32.mrb[0].mxu0
  %182 = vdwg.mxu0
  %v183 = vadd.f32 %v120, %v177
  %v184 = vadd.f32 %v121, %v180
  %185 = vst.msk [vmem:[#allocation2] sm:$0xff] %vm73, %v183
  %186 = vst.msk [vmem:[#allocation2 + $0x8] sm:$0xff] %vm73, %v184
  // Predicated region
  $region34: #{transformer_encoder.11} parent=0 // pred_check
    %p187 = pneg %p29
  $region35: #{transformer_encoder.11} parent=0 // pred_check_branch
    %189 = sbr.rel (%p187) target = $region37
  $region36: #{transformer_encoder.11} parent=0 // pred_region
    %v190 = vld [vmem:[#allocation2] sm:$0xff]
    %v191 = vld [vmem:[#allocation2 + $0x8] sm:$0xff]
    %v192 = vsel %vm73, %v190, 0.0
    %193 = vadd.xlane.f32.xlu0 %v192
    %v194 = vpop.xlane.xlu0 %193
    %v195 = vsel %vm73, %v191, 0.0
    %196 = vadd.xlane.f32.xlu0 %v195
    %v197 = vpop.xlane.xlu0 %196
    %v198 = vrcp.pop 32.0
    %v199 = vmul.f32 %v194, %v198
    %v200 = vmul.f32 %v197, %v198
    %v201 = vsub.f32 %v190, %v199
    %v202 = vsub.f32 %v191, %v200
    %v203 = vmul.f32 %v201, %v201
    %v204 = vmul.f32 %v202, %v202
    %v205 = vsel %vm73, %v203, 0.0
    %206 = vadd.xlane.f32.xlu0 %v205
    %v207 = vpop.xlane.xlu0 %206
    %v208 = vsel %vm73, %v204, 0.0
    %209 = vadd.xlane.f32.xlu0 %v208
    %v210 = vpop.xlane.xlu0 %209
    %v211 = vmul.f32 %v207, %v198
    %v212 = vmul.f32 %v210, %v198
    %v213 = vadd.f32 %v211, 1e-05
    %v214 = vadd.f32 %v212, 1e-05
    %v215 = vrsqrt.pop %v213
    %v216 = vrsqrt.pop %v214
    %v217 = vmul.f32 %v201, %v215
    %v218 = vmul.f32 %v202, %v216
    %v219 = vld [vmem:[%s5] sm:$0x1]
    %v220 = vunpack.c.l.bf16 %v219
    %v221 = vlaneseq
    %v222 = vshrl.u32 %v221, 7
    %v223 = vsub.s32 0, %v222
    %v224 = vrot.slane %v220, %v223
    %v225 = vmul.f32 %v217, %v224
    %v226 = vmul.f32 %v218, %v224
    %v227 = vld [vmem:[%s6] sm:$0x1]
    %v228 = vunpack.c.l.bf16 %v227
    %v229 = vlaneseq
    %v230 = vshrl.u32 %v229, 7
    %v231 = vsub.s32 0, %v230
    %v232 = vrot.slane %v228, %v231
    %v233 = vadd.f32 %v225, %v232
    %v234 = vadd.f32 %v226, %v232
    %v235 = vpack.c.bf16 %v234, %v233
    %v237 = vunpack.c.l.b16 %v235
    %v238 = vunpack.c.h.b16 %v235
    %v239 = vpack.c.b16 %v237, %v237
    %v240 = vpack.c.b16 %v238, %v238
    %vm243 = vcmask 257024
    %244 = vst.msk [vmem:[%s7] sm:$0xf] %vm243, %v239
    %245 = vst.msk [vmem:[%s7 + $0x4] sm:$0xf] %vm243, %v240
  $region37: #{transformer_encoder.11} parent=0 // pred_fallthru
    _
  // Predicated region
  $region38: #{transformer_encoder.11} parent=0 // pred_check
    _
  $region39: #{transformer_encoder.11} parent=0 // pred_check_branch
    %247 = sbr.rel (0) target = $region41
  $region40: #{transformer_encoder.11} parent=0 // pred_region
    _
  $region41: #{transformer_encoder.11} parent=0 // pred_fallthru
    _
  // Predicated region
  $region42: #{transformer_encoder.11} parent=0 // pred_check
    _
  $region43: #{transformer_encoder.11} parent=0 // pred_check_branch
    %249 = sbr.rel (0) target = $region45
  $region44: #{transformer_encoder.11} parent=0 // pred_region
    _
  $region45: #{transformer_encoder.11} parent=0 // pred_fallthru
    _

// kernel: transformer_encoder.9
$region0: #{transformer_encoder.9}
  #allocation0 [shape = 'u32[]', space=smem, size = 0x4, offset = 0x4, fixed_abs, tag = 'smem constant byte address 0x4 - core index']
  #allocation1 [shape = 'u32[144,128]{1,0:T(1,128)}', space=vmem, size = 0x12000, scoped, tag = 'internal scratch']
  #allocation2 [shape = 'f32[8,1]{1,0:T(8,128)}', space=vmem, size = 0x1000, scoped, tag = 'scratch operand']
  #allocation3 [shape = 'f32[8,1]{1,0:T(8,128)}', space=vmem, size = 0x1000, scoped, tag = 'scratch operand']
  #allocation4 [shape = 'f32[8,8]{1,0:T(8,128)}', space=vmem, size = 0x1000, scoped, tag = 'scratch operand']
  %s0 = inlined_call_operand.vmem [shape: bf16[2,4,8,8], index: 0, kind: input, shape index: {}]
  %s1 = inlined_call_operand.vmem [shape: bf16[2,4,8,8], index: 1, kind: input, shape index: {}]
  %s2 = inlined_call_operand.vmem [shape: bf16[2,4,8,8], index: 2, kind: input, shape index: {}]
  %s3 = inlined_call_operand.vmem [shape: bf16[2,4,8,8], index: 3, kind: output, shape index: {}]
  %s4 = sld [smem:[#allocation0]]
  $region53: #{transformer_encoder.9} parent=0
    _
  %s6 = ssub.s32 1, %s4
  %s7 = scalar_select 0, %s6, %s4
  loop: start=0, step=1, limit=10
  $region2: #{transformer_encoder.9} parent=0 // loop_pre_header
    _
  $region3: #{transformer_encoder.9} parent=0 // loop_header
    %s9 = sphi 0, %s13
    %p10 = scmp.ge.s32.totalorder %s9, 10
    %s16 = sphi 0, %s42
    %s17 = sphi 0, %s38
    %s18 = sphi 0, %s34
    %s19 = sphi 0, %s30
    %s20 = sphi 0, %s16
    %s21 = sphi 0, %s17
    %s22 = sphi 0, %s18
    %s23 = sphi 0, %s19
    %s24 = sphi 0, %s20
    %s25 = sphi 0, %s21
    %s26 = sphi 0, %s22
    %s27 = sphi 0, %s23
    %s49 = sphi 0, %s51
    %s52 = sphi 0, %s49
    %s53 = sphi 0, %s52
    %s69 = sphi 0, %s53
    %s79 = sphi 0, %s81
    %s82 = sphi 0, %s79
    %s83 = sphi 0, %s82
    %s99 = sphi 0, %s83
    %s109 = sphi 0, %s111
    %s112 = sphi 0, %s109
    %s113 = sphi 0, %s112
    %s129 = sphi 0, %s113
    %s139 = sphi 0, %s141
    %s142 = sphi 0, %s139
    %s143 = sphi 0, %s142
    %s159 = sphi 0, %s143
  $region4: #{transformer_encoder.9} parent=0 // loop_header_branch
    %12 = sbr.rel (%p10) target = $region8
  $region5: #{transformer_encoder.9} parent=0 // loop_body
    %s14 = ssub.s32 %s9, 1
    %s15 = ssub.s32 %s9, 2
    %s28 = sadd.s32 1, %s19
    %p29 = scmp.ge.s32.totalorder %s28, 1
    %s30 = scalar_select %p29, 0, %s28
    %s31 = sadd.s32 1, %s18
    %s32 = scalar_select %p29, %s31, %s18
    %p33 = scmp.ge.s32.totalorder %s32, 1
    %s34 = scalar_select %p33, 0, %s32
    %s35 = sadd.s32 1, %s17
    %s36 = scalar_select %p33, %s35, %s17
    %p37 = scmp.ge.s32.totalorder %s36, 4
    %s38 = scalar_select %p37, 0, %s36
    %s39 = sadd.s32 1, %s16
    %s40 = scalar_select %p37, %s39, %s16
    %p41 = scmp.ge.s32.totalorder %s40, 2
    %s42 = scalar_select %p41, 0, %s40
    %s43 = ssub.s32 %s16, %s42
    %s44 = ssub.s32 %s17, %s38
    %s45 = sor.u32 %s43, %s44
    %s46 = ssub.s32 %s18, %s34
    %s47 = sor.u32 %s45, %s46
    %p48 = scmp.eq.s32.totalorder %s47, 0
    %s50 = sadd.s32 %s49, 1
    %s51 = scalar_select %p48, %s49, %s50
    %p54 = pneg %p48
    %p55 = scmp.eq.s32.totalorder %s9, 7
    %p56 = por %p54, %p55
    %p57 = scmp.ne.s32.totalorder %s49, %s52
    %p58 = scmp.eq.s32.totalorder %s9, 0
    %p59 = por %p57, %p58
    %p60 = scmp.ne.s32.totalorder %s49, %s52
    %p61 = scmp.eq.s32.totalorder %s14, 7
    %p62 = por %p60, %p61
    %p63 = scmp.ne.s32.totalorder %s52, %s53
    %p64 = scmp.eq.s32.totalorder %s14, 0
    %p65 = por %p63, %p64
    %p66 = scmp.ne.s32.totalorder %s52, %s53
    %p67 = scmp.eq.s32.totalorder %s15, 7
    %p68 = por %p66, %p67
    %p70 = scmp.ne.s32.totalorder %s53, %s69
    %p71 = scmp.eq.s32.totalorder %s15, 0
    %p72 = por %p70, %p71
    %s73 = ssub.s32 %s16, %s42
    %s74 = ssub.s32 %s17, %s38
    %s75 = sor.u32 %s73, %s74
    %s76 = ssub.s32 %s19, %s30
    %s77 = sor.u32 %s75, %s76
    %p78 = scmp.eq.s32.totalorder %s77, 0
    %s80 = sadd.s32 %s79, 1
    %s81 = scalar_select %p78, %s79, %s80
    %p84 = pneg %p78
    %p85 = scmp.eq.s32.totalorder %s9, 7
    %p86 = por %p84, %p85
    %p87 = scmp.ne.s32.totalorder %s79, %s82
    %p88 = scmp.eq.s32.totalorder %s9, 0
    %p89 = por %p87, %p88
    %p90 = scmp.ne.s32.totalorder %s79, %s82
    %p91 = scmp.eq.s32.totalorder %s14, 7
    %p92 = por %p90, %p91
    %p93 = scmp.ne.s32.totalorder %s82, %s83
    %p94 = scmp.eq.s32.totalorder %s14, 0
    %p95 = por %p93, %p94
    %p96 = scmp.ne.s32.totalorder %s82, %s83
    %p97 = scmp.eq.s32.totalorder %s15, 7
    %p98 = por %p96, %p97
    %p100 = scmp.ne.s32.totalorder %s83, %s99
    %p101 = scmp.eq.s32.totalorder %s15, 0
    %p102 = por %p100, %p101
    %s103 = ssub.s32 %s16, %s42
    %s104 = ssub.s32 %s17, %s38
    %s105 = sor.u32 %s103, %s104
    %s106 = ssub.s32 %s19, %s30
    %s107 = sor.u32 %s105, %s106
    %p108 = scmp.eq.s32.totalorder %s107, 0
    %s110 = sadd.s32 %s109, 1
    %s111 = scalar_select %p108, %s109, %s110
    %p114 = pneg %p108
    %p115 = scmp.eq.s32.totalorder %s9, 7
    %p116 = por %p114, %p115
    %p117 = scmp.ne.s32.totalorder %s109, %s112
    %p118 = scmp.eq.s32.totalorder %s9, 0
    %p119 = por %p117, %p118
    %p120 = scmp.ne.s32.totalorder %s109, %s112
    %p121 = scmp.eq.s32.totalorder %s14, 7
    %p122 = por %p120, %p121
    %p123 = scmp.ne.s32.totalorder %s112, %s113
    %p124 = scmp.eq.s32.totalorder %s14, 0
    %p125 = por %p123, %p124
    %p126 = scmp.ne.s32.totalorder %s112, %s113
    %p127 = scmp.eq.s32.totalorder %s15, 7
    %p128 = por %p126, %p127
    %p130 = scmp.ne.s32.totalorder %s113, %s129
    %p131 = scmp.eq.s32.totalorder %s15, 0
    %p132 = por %p130, %p131
    %s133 = ssub.s32 %s16, %s42
    %s134 = ssub.s32 %s17, %s38
    %s135 = sor.u32 %s133, %s134
    %s136 = ssub.s32 %s18, %s34
    %s137 = sor.u32 %s135, %s136
    %p138 = scmp.eq.s32.totalorder %s137, 0
    %s140 = sadd.s32 %s139, 1
    %s141 = scalar_select %p138, %s139, %s140
    %p144 = pneg %p138
    %p145 = scmp.eq.s32.totalorder %s9, 7
    %p146 = por %p144, %p145
    %p147 = scmp.ne.s32.totalorder %s139, %s142
    %p148 = scmp.eq.s32.totalorder %s9, 0
    %p149 = por %p147, %p148
    %p150 = scmp.ne.s32.totalorder %s139, %s142
    %p151 = scmp.eq.s32.totalorder %s14, 7
    %p152 = por %p150, %p151
    %p153 = scmp.ne.s32.totalorder %s142, %s143
    %p154 = scmp.eq.s32.totalorder %s14, 0
    %p155 = por %p153, %p154
    %p156 = scmp.ne.s32.totalorder %s142, %s143
    %p157 = scmp.eq.s32.totalorder %s15, 7
    %p158 = por %p156, %p157
    %p160 = scmp.ne.s32.totalorder %s143, %s159
    %p161 = scmp.eq.s32.totalorder %s15, 0
    %p162 = por %p160, %p161
    %p163 = scmp.le.s32.totalorder 1, %s9
    %p164 = scmp.lt.s32.totalorder %s9, 9
    %p165 = pnand %p163, %p164
    %p166 = pneg %p165
    // Predicated region
    $region9: #{transformer_encoder.9} parent=5 // pred_check
      _
    $region10: #{transformer_encoder.9} parent=5 // pred_check_branch
      %168 = sbr.rel (%p165) target = $region12
    $region11: #{transformer_encoder.9} parent=5 // pred_region
      %s169 = ssub.s32 %s9, 1
    $region12: #{transformer_encoder.9} parent=5 // pred_fallthru
      _
    %p170 = scmp.lt.s32.totalorder %s9, 8
    // Predicated region
    $region13: #{transformer_encoder.9} parent=5 // pred_check
      %p171 = pneg %p170
    $region14: #{transformer_encoder.9} parent=5 // pred_check_branch
      %173 = sbr.rel (%p171) target = $region16
    $region15: #{transformer_encoder.9} parent=5 // pred_region
      // Predicated region
      $region17: #{transformer_encoder.9} parent=15 // pred_check
        %p174 = pneg %p59
      $region18: #{transformer_encoder.9} parent=15 // pred_check_branch
        %176 = sbr.rel (%p174) target = $region20
      $region19: #{transformer_encoder.9} parent=15 // pred_region
        %p177 = scmp.lt.s32.totalorder %s16, 1
        %s178 = scalar_select %p177, %s16, 1
        %p179 = scmp.lt.s32.totalorder %s17, 3
        %s180 = scalar_select %p179, %s17, 3
        %p181 = scmp.lt.s32.totalorder %s18, 0
        %s182 = scalar_select %p181, %s18, 0
        %s183 = sadd.s32 %s182, %s180
        %s184 = smul.addr %s178, 4
        %s185 = sadd.s32 %s183, %s184
        %s186 = smul.addr %s185, 4
        %s187 = scalar_lea.vmem %s0, %s186
      $region20: #{transformer_encoder.9} parent=15 // pred_fallthru
        _
      // Predicated region
      $region21: #{transformer_encoder.9} parent=15 // pred_check
        %p188 = pneg %p89
      $region22: #{transformer_encoder.9} parent=15 // pred_check_branch
        %190 = sbr.rel (%p188) target = $region24
      $region23: #{transformer_encoder.9} parent=15 // pred_region
        %p191 = scmp.lt.s32.totalorder %s16, 1
        %s192 = scalar_select %p191, %s16, 1
        %p193 = scmp.lt.s32.totalorder %s17, 3
        %s194 = scalar_select %p193, %s17, 3
        %p195 = scmp.lt.s32.totalorder %s19, 0
        %s196 = scalar_select %p195, %s19, 0
        %s197 = sadd.s32 %s196, %s194
        %s198 = smul.addr %s192, 4
        %s199 = sadd.s32 %s197, %s198
        %s200 = smul.addr %s199, 4
        %s201 = scalar_lea.vmem %s1, %s200
      $region24: #{transformer_encoder.9} parent=15 // pred_fallthru
        _
      // Predicated region
      $region25: #{transformer_encoder.9} parent=15 // pred_check
        %p202 = pneg %p119
      $region26: #{transformer_encoder.9} parent=15 // pred_check_branch
        %204 = sbr.rel (%p202) target = $region28
      $region27: #{transformer_encoder.9} parent=15 // pred_region
        %p205 = scmp.lt.s32.totalorder %s16, 1
        %s206 = scalar_select %p205, %s16, 1
        %p207 = scmp.lt.s32.totalorder %s17, 3
        %s208 = scalar_select %p207, %s17, 3
        %p209 = scmp.lt.s32.totalorder %s19, 0
        %s210 = scalar_select %p209, %s19, 0
        %s211 = sadd.s32 %s210, %s208
        %s212 = smul.addr %s206, 4
        %s213 = sadd.s32 %s211, %s212
        %s214 = smul.addr %s213, 4
        %s215 = scalar_lea.vmem %s2, %s214
      $region28: #{transformer_encoder.9} parent=15 // pred_fallthru
        _
    $region16: #{transformer_encoder.9} parent=5 // pred_fallthru
      _
    %p216 = scmp.le.s32.totalorder 1, %s9
    %p217 = scmp.lt.s32.totalorder %s9, 9
    %p218 = pnand %p216, %p217
    %p219 = pneg %p218
    // Predicated region
    $region29: #{transformer_encoder.9} parent=5 // pred_check
      _
    $region30: #{transformer_encoder.9} parent=5 // pred_check_branch
      %221 = sbr.rel (%p218) target = $region32
    $region31: #{transformer_encoder.9} parent=5 // pred_region
      %s222 = ssub.s32 %s9, 1
      %p223 = scmp.lt.s32.totalorder %s20, 1
      %s224 = scalar_select %p223, %s20, 1
      %p225 = scmp.lt.s32.totalorder %s21, 3
      %s226 = scalar_select %p225, %s21, 3
      %p227 = scmp.lt.s32.totalorder %s22, 0
      %s228 = scalar_select %p227, %s22, 0
      %s229 = sadd.s32 %s228, %s226
      %s230 = smul.addr %s224, 4
      %s231 = sadd.s32 %s229, %s230
      %s232 = smul.addr %s231, 4
      %s233 = scalar_lea.vmem %s0, %s232
      %p234 = pneg %p65
      %p235 = pneg %p62
      %p236 = scmp.lt.s32.totalorder %s20, 1
      %s237 = scalar_select %p236, %s20, 1
      %p238 = scmp.lt.s32.totalorder %s21, 3
      %s239 = scalar_select %p238, %s21, 3
      %p240 = scmp.lt.s32.totalorder %s23, 0
      %s241 = scalar_select %p240, %s23, 0
      %s242 = sadd.s32 %s241, %s239
      %s243 = smul.addr %s237, 4
      %s244 = sadd.s32 %s242, %s243
      %s245 = smul.addr %s244, 4
      %s246 = scalar_lea.vmem %s1, %s245
      %p247 = pneg %p95
      %p248 = pneg %p92
      %p249 = scmp.lt.s32.totalorder %s20, 1
      %s250 = scalar_select %p249, %s20, 1
      %p251 = scmp.lt.s32.totalorder %s21, 3
      %s252 = scalar_select %p251, %s21, 3
      %p253 = scmp.lt.s32.totalorder %s23, 0
      %s254 = scalar_select %p253, %s23, 0
      %s255 = sadd.s32 %s254, %s252
      %s256 = smul.addr %s250, 4
      %s257 = sadd.s32 %s255, %s256
      %s258 = smul.addr %s257, 4
      %s259 = scalar_lea.vmem %s2, %s258
      %p260 = pneg %p125
      %p261 = pneg %p122
      %p262 = pneg %p155
      %p263 = pneg %p152
      %p264 = scmp.lt.s32.totalorder %s20, 1
      %s265 = scalar_select %p264, %s20, 1
      %p266 = scmp.lt.s32.totalorder %s21, 3
      %s267 = scalar_select %p266, %s21, 3
      %p268 = scmp.lt.s32.totalorder %s22, 0
      %s269 = scalar_select %p268, %s22, 0
      %s270 = sadd.s32 %s269, %s267
      %s271 = smul.addr %s265, 4
      %s272 = sadd.s32 %s270, %s271
      %s273 = smul.addr %s272, 4
      %s274 = scalar_lea.vmem %s3, %s273
      %p275 = scmp.lt.s32.totalorder %s20, 1
      %s276 = scalar_select %p275, %s20, 1
      %p277 = scmp.lt.s32.totalorder %s21, 3
      %s278 = scalar_select %p277, %s21, 3
      %p279 = scmp.lt.s32.totalorder %s22, 0
      %s280 = scalar_select %p279, %s22, 0
      %s281 = sadd.s32 %s280, %s278
      %s282 = smul.addr %s276, 4
      %s283 = sadd.s32 %s281, %s282
      %s284 = smul.addr %s283, 4
      %s285 = scalar_lea.vmem %s0, %s284
      %p286 = scmp.lt.s32.totalorder %s20, 1
      %s287 = scalar_select %p286, %s20, 1
      %p288 = scmp.lt.s32.totalorder %s21, 3
      %s289 = scalar_select %p288, %s21, 3
      %p290 = scmp.lt.s32.totalorder %s23, 0
      %s291 = scalar_select %p290, %s23, 0
      %s292 = sadd.s32 %s291, %s289
      %s293 = smul.addr %s287, 4
      %s294 = sadd.s32 %s292, %s293
      %s295 = smul.addr %s294, 4
      %s296 = scalar_lea.vmem %s1, %s295
      %p297 = scmp.lt.s32.totalorder %s20, 1
      %s298 = scalar_select %p297, %s20, 1
      %p299 = scmp.lt.s32.totalorder %s21, 3
      %s300 = scalar_select %p299, %s21, 3
      %p301 = scmp.lt.s32.totalorder %s23, 0
      %s302 = scalar_select %p301, %s23, 0
      %s303 = sadd.s32 %s302, %s300
      %s304 = smul.addr %s298, 4
      %s305 = sadd.s32 %s303, %s304
      %s306 = smul.addr %s305, 4
      %s307 = scalar_lea.vmem %s2, %s306
      %p308 = scmp.lt.s32.totalorder %s20, 1
      %s309 = scalar_select %p308, %s20, 1
      %p310 = scmp.lt.s32.totalorder %s21, 3
      %s311 = scalar_select %p310, %s21, 3
      %p312 = scmp.lt.s32.totalorder %s22, 0
      %s313 = scalar_select %p312, %s22, 0
      %s314 = sadd.s32 %s313, %s311
      %s315 = smul.addr %s309, 4
      %s316 = sadd.s32 %s314, %s315
      %s317 = smul.addr %s316, 4
      %s318 = scalar_lea.vmem %s3, %s317
      %p320 = scmp.eq.s32.totalorder %s23, 0
      // Predicated region
      $region33: #{transformer_encoder.9} parent=31 // pred_check
        %p321 = pneg %p320
      $region34: #{transformer_encoder.9} parent=31 // pred_check_branch
        %323 = sbr.rel (%p321) target = $region36
      $region35: #{transformer_encoder.9} parent=31 // pred_region
        %vm324 = vcmask 7168
        %325 = vst.msk [vmem:[#allocation2] sm:$0xff] %vm324, -inf
        %326 = vst.msk [vmem:[#allocation3] sm:$0xff] %vm324, 0.0
        %vm327 = vcmask 64512
        %328 = vst.msk [vmem:[#allocation4] sm:$0xff] %vm327, 0.0
      $region36: #{transformer_encoder.9} parent=31 // pred_fallthru
        _
      %v329 = vld [vmem:[%s285] sm:$0xf]
      %v330 = vld [vmem:[%s296] sm:$0xf]
      %vm331 = vcmask 64512
      %v333 = vsel %vm331, %v329, 0
      %v336 = vsel %vm331, %v330, 0
      %338 = vmatprep.subr.bf16.mxu0 0
      %339 = vmatpush1.bf16.xpose.msra.mxu0 %v336
      %340 = vmatprep.subr.bf16.mxu0 0
      %341 = vmatpush1.bf16.xpose.msra.mxu0 0
      %342 = vmatprep.subr.bf16.mxu0 0
      %343 = vmatpush1.bf16.xpose.msra.mxu0 0
      %344 = vmatprep.subr.bf16.mxu0 0
      %345 = vmatpush1.bf16.xpose.msra.mxu0 0
      %346 = vmatprep.subr.bf16.mxu0 0
      %347 = vmatpush1.bf16.xpose.msra.mxu0 0
      %348 = vmatprep.subr.bf16.mxu0 0
      %349 = vmatpush1.bf16.xpose.msra.mxu0 0
      %350 = vmatprep.subr.bf16.mxu0 0
      %351 = vmatpush1.bf16.xpose.msra.mxu0 0
      %352 = vmatprep.subr.bf16.mxu0 0
      %353 = vmatpush1.bf16.xpose.msra.mxu0 0
      %354 = vmatprep.subr.bf16.mxu0 0
      %355 = vmatpush1.bf16.xpose.msra.mxu0 0
      %356 = vmatprep.subr.bf16.mxu0 0
      %357 = vmatpush1.bf16.xpose.msra.mxu0 0
      %358 = vmatprep.subr.bf16.mxu0 0
      %359 = vmatpush1.bf16.xpose.msra.mxu0 0
      %360 = vmatprep.subr.bf16.mxu0 0
      %361 = vmatpush1.bf16.xpose.msra.mxu0 0
      %362 = vmatprep.subr.bf16.mxu0 0
      %363 = vmatpush1.bf16.xpose.msra.mxu0 0
      %364 = vmatprep.subr.bf16.mxu0 0
      %365 = vmatpush1.bf16.xpose.msra.mxu0 0
      %366 = vmatprep.subr.bf16.mxu0 0
      %367 = vmatpush1.bf16.xpose.msra.mxu0 0
      %368 = vmatprep.subr.bf16.mxu0 0
      %369 = vmatpush1.bf16.xpose.msra.mxu0 0
      %370 = vmatprep.mubr.bf16.mxu0 0
      %371 = vmatmul.mubr.bf16.gmra.mrb[0].mxu0 %v333
      %v372 = vpop.f32.mrb[0].mxu0
      %v373 = vadd.f32 0.0, %v372
      %v374 = vpop.f32.mrb[0].mxu0
      %v375 = vpop.f32.mrb[0].mxu0
      %v376 = vpop.f32.mrb[0].mxu0
      %377 = vdwg.mxu0
      %v378 = vmul.f32 %v373, 0.35355338
      %v379 = vld [vmem:[#allocation2] sm:$0xff]
      %v380 = vsel %vm331, %v378, -inf
      %381 = vmax.xlane.f32.xlu0 %v380
      %v382 = vpop.xlane.xlu0 %381
      %v383 = vmax.f32 %v379, %v382
      %v384 = vsub.f32 %v379, %v383
      %v385 = vmul.f32 %v384, 1.442695
      %v386 = vpow.pop %v385
      %388 = vset.pattern.permute.xlu0 0
      %389 = vperm.xlu0 %388, %v383
      %v390 = vpop.permute.xlu0 %389
      %v392 = vsub.f32 %v378, %v390
      %v393 = vmul.f32 %v392, 1.442695
      %v394 = vpow.pop %v393
      %v395 = vld [vmem:[#allocation3] sm:$0xff]
      %v396 = vmul.f32 %v386, %v395
      %v397 = vsel %vm331, %v394, 0.0
      %398 = vadd.xlane.f32.xlu0 %v397
      %v399 = vpop.xlane.xlu0 %398
      %v400 = vadd.f32 %v396, %v399
      %vm401 = vcmask 7168
      %402 = vst.msk [vmem:[#allocation3] sm:$0xff] %vm401, %v400
      %v403 = vld [vmem:[#allocation4] sm:$0xff]
      %405 = vset.pattern.permute.xlu0 0
      %406 = vperm.xlu0 %405, %v386
      %v407 = vpop.permute.xlu0 %406
      %v409 = vmul.f32 %v407, %v403
      %v410 = vpack.c.bf16 %v394, %v394
      %v411 = vld [vmem:[%s307] sm:$0xf]
      %v413 = vsel %vm331, %v410, 0
      %vm415 = vcmask 1043456
      %v417 = vsel %vm415, %v411, 0
      %419 = vmatprep.subr.bf16.mxu0 0
      %420 = vmatpush1.bf16.msra.mxu0 %v417
      %421 = vmatprep.subr.bf16.mxu0 0
      %422 = vmatpush1.bf16.msra.mxu0 0
      %423 = vmatprep.subr.bf16.mxu0 0
      %424 = vmatpush1.bf16.msra.mxu0 0
      %425 = vmatprep.subr.bf16.mxu0 0
      %426 = vmatpush1.bf16.msra.mxu0 0
      %427 = vmatprep.subr.bf16.mxu0 0
      %428 = vmatpush1.bf16.msra.mxu0 0
      %429 = vmatprep.subr.bf16.mxu0 0
      %430 = vmatpush1.bf16.msra.mxu0 0
      %431 = vmatprep.subr.bf16.mxu0 0
      %432 = vmatpush1.bf16.msra.mxu0 0
      %433 = vmatprep.subr.bf16.mxu0 0
      %434 = vmatpush1.bf16.msra.mxu0 0
      %435 = vmatprep.subr.bf16.mxu0 0
      %436 = vmatpush1.bf16.msra.mxu0 0
      %437 = vmatprep.subr.bf16.mxu0 0
      %438 = vmatpush1.bf16.msra.mxu0 0
      %439 = vmatprep.subr.bf16.mxu0 0
      %440 = vmatpush1.bf16.msra.mxu0 0
      %441 = vmatprep.subr.bf16.mxu0 0
      %442 = vmatpush1.bf16.msra.mxu0 0
      %443 = vmatprep.subr.bf16.mxu0 0
      %444 = vmatpush1.bf16.msra.mxu0 0
      %445 = vmatprep.subr.bf16.mxu0 0
      %446 = vmatpush1.bf16.msra.mxu0 0
      %447 = vmatprep.subr.bf16.mxu0 0
      %448 = vmatpush1.bf16.msra.mxu0 0
      %449 = vmatprep.subr.bf16.mxu0 0
      %450 = vmatpush1.bf16.msra.mxu0 0
      %451 = vmatprep.mubr.bf16.mxu0 0
      %452 = vmatmul.mubr.bf16.gmra.mrb[0].mxu0 %v413
      %v453 = vpop.f32.mrb[0].mxu0
      %v454 = vadd.f32 0.0, %v453
      %v455 = vpop.f32.mrb[0].mxu0
      %v456 = vpop.f32.mrb[0].mxu0
      %v457 = vpop.f32.mrb[0].mxu0
      %458 = vdwg.mxu0
      %v459 = vadd.f32 %v409, %v454
      %460 = vst.msk [vmem:[#allocation4] sm:$0xff] %vm331, %v459
      %461 = vst.msk [vmem:[#allocation2] sm:$0xff] %vm401, %v383
      // Predicated region
      $region37: #{transformer_encoder.9} parent=31 // pred_check
        %p462 = pneg %p320
      $region38: #{transformer_encoder.9} parent=31 // pred_check_branch
        %464 = sbr.rel (%p462) target = $region40
      $region39: #{transformer_encoder.9} parent=31 // pred_region
        %v465 = vld [vmem:[#allocation4] sm:$0xff]
        %v466 = vld [vmem:[#allocation3] sm:$0xff]
        %468 = vset.pattern.permute.xlu0 0
        %469 = vperm.xlu0 %468, %v466
        %v470 = vpop.permute.xlu0 %469
        %v472 = vrcp.pop %v470
        %v473 = vmul.f32 %v465, %v472
        %v474 = vpack.c.bf16 %v473, %v473
        %vm475 = vcmask 60416
        %476 = vst.msk [vmem:[%s318] sm:$0xf] %vm475, %v474
      $region40: #{transformer_encoder.9} parent=31 // pred_fallthru
        _
      %p477 = scmp.lt.s32.totalorder %s20, 1
      %s478 = scalar_select %p477, %s20, 1
      %p479 = scmp.lt.s32.totalorder %s21, 3
      %s480 = scalar_select %p479, %s21, 3
      %p481 = scmp.lt.s32.totalorder %s22, 0
      %s482 = scalar_select %p481, %s22, 0
      %s483 = sadd.s32 %s482, %s480
      %s484 = smul.addr %s478, 4
      %s485 = sadd.s32 %s483, %s484
      %s486 = smul.addr %s485, 4
      %s487 = scalar_lea.vmem %s3, %s486
      // Predicated region
      $region41: #{transformer_encoder.9} parent=31 // pred_check
        %p488 = pneg %p152
      $region42: #{transformer_encoder.9} parent=31 // pred_check_branch
        %490 = sbr.rel (%p488) target = $region44
      $region43: #{transformer_encoder.9} parent=31 // pred_region
        _
      $region44: #{transformer_encoder.9} parent=31 // pred_fallthru
        _
    $region32: #{transformer_encoder.9} parent=5 // pred_fallthru
      _
    %p491 = scmp.le.s32.totalorder 2, %s9
    // Predicated region
    $region45: #{transformer_encoder.9} parent=5 // pred_check
      %p492 = pneg %p491
    $region46: #{transformer_encoder.9} parent=5 // pred_check_branch
      %494 = sbr.rel (%p492) target = $region48
    $region47: #{transformer_encoder.9} parent=5 // pred_region
      %s495 = ssub.s32 %s9, 2
      // Predicated region
      $region49: #{transformer_encoder.9} parent=47 // pred_check
        %p496 = pneg %p158
      $region50: #{transformer_encoder.9} parent=47 // pred_check_branch
        %498 = sbr.rel (%p496) target = $region52
      $region51: #{transformer_encoder.9} parent=47 // pred_region
        %p499 = scmp.lt.s32.totalorder %s24, 1
        %s500 = scalar_select %p499, %s24, 1
        %p501 = scmp.lt.s32.totalorder %s25, 3
        %s502 = scalar_select %p501, %s25, 3
        %p503 = scmp.lt.s32.totalorder %s26, 0
        %s504 = scalar_select %p503, %s26, 0
        %s505 = sadd.s32 %s504, %s502
        %s506 = smul.addr %s500, 4
        %s507 = sadd.s32 %s505, %s506
        %s508 = smul.addr %s507, 4
        %s509 = scalar_lea.vmem %s3, %s508
      $region52: #{transformer_encoder.9} parent=47 // pred_fallthru
        _
    $region48: #{transformer_encoder.9} parent=5 // pred_fallthru
      _
  $region6: #{transformer_encoder.9} parent=0 // loop_footer
    %s13 = sadd.s32 1, %s9
  $region7: #{transformer_encoder.9} parent=0 // loop_footer_branch
    %8 = sbr.rel target = $region3
  $region8: #{transformer_encoder.9} parent=0 // loop_exit
    _

// kernel: transformer_encoder.10
$region0: #{transformer_encoder.10}
  #allocation0 [shape = 'u32[]', space=smem, size = 0x4, offset = 0x4, fixed_abs, tag = 'smem constant byte address 0x4 - core index']
  #allocation1 [shape = 'u32[144,128]{1,0:T(1,128)}', space=vmem, size = 0x12000, scoped, tag = 'internal scratch']
  #allocation2 [shape = 'f32[16,32]{1,0:T(8,128)}', space=vmem, size = 0x2000, scoped, tag = 'scratch operand']
  %s0 = inlined_call_operand.vmem [shape: bf16[16,32], index: 0, kind: input, shape index: {}]
  %s1 = inlined_call_operand.vmem [shape: bf16[32,32], index: 1, kind: input, shape index: {}]
  %s2 = inlined_call_operand.vmem [shape: bf16[1,32], index: 2, kind: input, shape index: {}]
  %s3 = inlined_call_operand.vmem [shape: bf16[16,32], index: 3, kind: input, shape index: {}]
  %s4 = inlined_call_operand.vmem [shape: bf16[1,32], index: 4, kind: input, shape index: {}]
  %s5 = inlined_call_operand.vmem [shape: bf16[1,32], index: 5, kind: input, shape index: {}]
  %s6 = inlined_call_operand.vmem [shape: bf16[16,32], index: 6, kind: output, shape index: {}]
  %s7 = sld [smem:[#allocation0]]
  $region42: #{transformer_encoder.10} parent=0
    _
  %s9 = ssub.s32 1, %s7
  %s10 = scalar_select 0, %s9, %s7
  // Predicated region
  $region2: #{transformer_encoder.10} parent=0 // pred_check
    _
  $region3: #{transformer_encoder.10} parent=0 // pred_check_branch
    %12 = sbr.rel (0) target = $region5
  $region4: #{transformer_encoder.10} parent=0 // pred_region
    _
  $region5: #{transformer_encoder.10} parent=0 // pred_fallthru
    _
  // Predicated region
  $region6: #{transformer_encoder.10} parent=0 // pred_check
    _
  $region7: #{transformer_encoder.10} parent=0 // pred_check_branch
    %14 = sbr.rel (0) target = $region9
  $region8: #{transformer_encoder.10} parent=0 // pred_region
    _
  $region9: #{transformer_encoder.10} parent=0 // pred_fallthru
    _
  // Predicated region
  $region10: #{transformer_encoder.10} parent=0 // pred_check
    _
  $region11: #{transformer_encoder.10} parent=0 // pred_check_branch
    %16 = sbr.rel (0) target = $region13
  $region12: #{transformer_encoder.10} parent=0 // pred_region
    _
  $region13: #{transformer_encoder.10} parent=0 // pred_fallthru
    _
  // Predicated region
  $region14: #{transformer_encoder.10} parent=0 // pred_check
    _
  $region15: #{transformer_encoder.10} parent=0 // pred_check_branch
    %18 = sbr.rel (0) target = $region17
  $region16: #{transformer_encoder.10} parent=0 // pred_region
    _
  $region17: #{transformer_encoder.10} parent=0 // pred_fallthru
    _
  // Predicated region
  $region18: #{transformer_encoder.10} parent=0 // pred_check
    _
  $region19: #{transformer_encoder.10} parent=0 // pred_check_branch
    %20 = sbr.rel (0) target = $region21
  $region20: #{transformer_encoder.10} parent=0 // pred_region
    _
  $region21: #{transformer_encoder.10} parent=0 // pred_fallthru
    _
  // Predicated region
  $region22: #{transformer_encoder.10} parent=0 // pred_check
    _
  $region23: #{transformer_encoder.10} parent=0 // pred_check_branch
    %22 = sbr.rel (0) target = $region25
  $region24: #{transformer_encoder.10} parent=0 // pred_region
    _
  $region25: #{transformer_encoder.10} parent=0 // pred_fallthru
    _
  %p24 = scmp.eq.s32.totalorder 0, 0
  // Predicated region
  $region26: #{transformer_encoder.10} parent=0 // pred_check
    %p25 = pneg %p24
  $region27: #{transformer_encoder.10} parent=0 // pred_check_branch
    %27 = sbr.rel (%p25) target = $region29
  $region28: #{transformer_encoder.10} parent=0 // pred_region
    %v28 = vld [vmem:[%s3] sm:$0xf]
    %v29 = vld [vmem:[%s3 + $0x4] sm:$0xf]
    %v30 = vunpack.c.l.bf16 %v28
    %v31 = vunpack.c.l.bf16 %v29
    %v32 = vld [vmem:[%s2] sm:$0x1]
    %v33 = vunpack.c.l.bf16 %v32
    %v34 = vlaneseq
    %v35 = vshrl.u32 %v34, 7
    %v36 = vsub.s32 0, %v35
    %v37 = vrot.slane %v33, %v36
    %v38 = vadd.f32 %v30, %v37
    %v39 = vadd.f32 %v31, %v37
    %vm40 = vcmask 261120
    %41 = vst.msk [vmem:[#allocation2] sm:$0xff] %vm40, %v38
    %42 = vst.msk [vmem:[#allocation2 + $0x8] sm:$0xff] %vm40, %v39
  $region29: #{transformer_encoder.10} parent=0 // pred_fallthru
    _
  %v43 = vld [vmem:[#allocation2] sm:$0xff]
  %v44 = vld [vmem:[#allocation2 + $0x8] sm:$0xff]
  %v45 = vld [vmem:[%s0] sm:$0xf]
  %v46 = vld [vmem:[%s0 + $0x4] sm:$0xf]
  %v47 = vld [vmem:[%s1] sm:$0xf]
  %v48 = vld [vmem:[%s1 + $0x4] sm:$0xf]
  %v49 = vld [vmem:[%s1 + $0x8] sm:$0xf]
  %v50 = vld [vmem:[%s1 + $0xc] sm:$0xf]
  %v53 = vunpack.c.l.b16 %v45
  %v54 = vunpack.c.l.b16 %v46
  %v55 = vpack.c.b16 %v54, %v53
  %v60 = vunpack.c.l.b16 %v47
  %v61 = vunpack.c.l.b16 %v48
  %v62 = vunpack.c.l.b16 %v49
  %v63 = vunpack.c.l.b16 %v50
  %v64 = vpack.c.b16 %v61, %v60
  %v65 = vpack.c.b16 %v63, %v62
  %vm68 = vcmask 261120
  %v70 = vsel %vm68, %v55, 0
  %72 = vmatprep.subr.bf16.mxu0 0
  %73 = vmatpush1.bf16.msra.mxu0 %v64
  %74 = vmatprep.subr.bf16.mxu0 0
  %75 = vmatpush1.bf16.msra.mxu0 %v65
  %76 = vmatprep.subr.bf16.mxu0 0
  %77 = vmatpush1.bf16.msra.mxu0 0
  %78 = vmatprep.subr.bf16.mxu0 0
  %79 = vmatpush1.bf16.msra.mxu0 0
  %80 = vmatprep.subr.bf16.mxu0 0
  %81 = vmatpush1.bf16.msra.mxu0 0
  %82 = vmatprep.subr.bf16.mxu0 0
  %83 = vmatpush1.bf16.msra.mxu0 0
  %84 = vmatprep.subr.bf16.mxu0 0
  %85 = vmatpush1.bf16.msra.mxu0 0
  %86 = vmatprep.subr.bf16.mxu0 0
  %87 = vmatpush1.bf16.msra.mxu0 0
  %88 = vmatprep.subr.bf16.mxu0 0
  %89 = vmatpush1.bf16.msra.mxu0 0
  %90 = vmatprep.subr.bf16.mxu0 0
  %91 = vmatpush1.bf16.msra.mxu0 0
  %92 = vmatprep.subr.bf16.mxu0 0
  %93 = vmatpush1.bf16.msra.mxu0 0
  %94 = vmatprep.subr.bf16.mxu0 0
  %95 = vmatpush1.bf16.msra.mxu0 0
  %96 = vmatprep.subr.bf16.mxu0 0
  %97 = vmatpush1.bf16.msra.mxu0 0
  %98 = vmatprep.subr.bf16.mxu0 0
  %99 = vmatpush1.bf16.msra.mxu0 0
  %100 = vmatprep.subr.bf16.mxu0 0
  %101 = vmatpush1.bf16.msra.mxu0 0
  %102 = vmatprep.subr.bf16.mxu0 0
  %103 = vmatpush1.bf16.msra.mxu0 0
  %104 = vmatprep.mubr.bf16.mxu0 0
  %105 = vmatmul.mubr.bf16.gmra.mrb[0].mxu0 %v70
  %v106 = vpop.f32.mrb[0].mxu0
  %v107 = vadd.f32 0.0, %v106
  %v108 = vpop.f32.mrb[0].mxu0
  %v109 = vpop.f32.mrb[0].mxu0
  %v110 = vadd.f32 0.0, %v109
  %v111 = vpop.f32.mrb[0].mxu0
  %112 = vdwg.mxu0
  %v113 = vadd.f32 %v43, %v107
  %v114 = vadd.f32 %v44, %v110
  %115 = vst.msk [vmem:[#allocation2] sm:$0xff] %vm68, %v113
  %116 = vst.msk [vmem:[#allocation2 + $0x8] sm:$0xff] %vm68, %v114
  // Predicated region
  $region30: #{transformer_encoder.10} parent=0 // pred_check
    %p117 = pneg %p24
  $region31: #{transformer_encoder.10} parent=0 // pred_check_branch
    %119 = sbr.rel (%p117) target = $region33
  $region32: #{transformer_encoder.10} parent=0 // pred_region
    %v120 = vld [vmem:[#allocation2] sm:$0xff]
    %v121 = vld [vmem:[#allocation2 + $0x8] sm:$0xff]
    %v122 = vsel %vm68, %v120, 0.0
    %123 = vadd.xlane.f32.xlu0 %v122
    %v124 = vpop.xlane.xlu0 %123
    %v125 = vsel %vm68, %v121, 0.0
    %126 = vadd.xlane.f32.xlu0 %v125
    %v127 = vpop.xlane.xlu0 %126
    %v128 = vrcp.pop 32.0
    %v129 = vmul.f32 %v124, %v128
    %v130 = vmul.f32 %v127, %v128
    %v131 = vsub.f32 %v120, %v129
    %v132 = vsub.f32 %v121, %v130
    %v133 = vmul.f32 %v131, %v131
    %v134 = vmul.f32 %v132, %v132
    %v135 = vsel %vm68, %v133, 0.0
    %136 = vadd.xlane.f32.xlu0 %v135
    %v137 = vpop.xlane.xlu0 %136
    %v138 = vsel %vm68, %v134, 0.0
    %139 = vadd.xlane.f32.xlu0 %v138
    %v140 = vpop.xlane.xlu0 %139
    %v141 = vmul.f32 %v137, %v128
    %v142 = vmul.f32 %v140, %v128
    %v143 = vadd.f32 %v141, 1e-05
    %v144 = vadd.f32 %v142, 1e-05
    %v145 = vrsqrt.pop %v143
    %v146 = vrsqrt.pop %v144
    %v147 = vmul.f32 %v131, %v145
    %v148 = vmul.f32 %v132, %v146
    %v149 = vld [vmem:[%s4] sm:$0x1]
    %v150 = vunpack.c.l.bf16 %v149
    %v151 = vlaneseq
    %v152 = vshrl.u32 %v151, 7
    %v153 = vsub.s32 0, %v152
    %v154 = vrot.slane %v150, %v153
    %v155 = vmul.f32 %v147, %v154
    %v156 = vmul.f32 %v148, %v154
    %v157 = vld [vmem:[%s5] sm:$0x1]
    %v158 = vunpack.c.l.bf16 %v157
    %v159 = vlaneseq
    %v160 = vshrl.u32 %v159, 7
    %v161 = vsub.s32 0, %v160
    %v162 = vrot.slane %v158, %v161
    %v163 = vadd.f32 %v155, %v162
    %v164 = vadd.f32 %v156, %v162
    %v165 = vpack.c.bf16 %v164, %v163
    %v167 = vunpack.c.l.b16 %v165
    %v168 = vunpack.c.h.b16 %v165
    %v169 = vpack.c.b16 %v167, %v167
    %v170 = vpack.c.b16 %v168, %v168
    %vm173 = vcmask 257024
    %174 = vst.msk [vmem:[%s6] sm:$0xf] %vm173, %v169
    %175 = vst.msk [vmem:[%s6 + $0x4] sm:$0xf] %vm173, %v170
  $region33: #{transformer_encoder.10} parent=0 // pred_fallthru
    _
  // Predicated region
  $region34: #{transformer_encoder.10} parent=0 // pred_check
    _
  $region35: #{transformer_encoder.10} parent=0 // pred_check_branch
    %177 = sbr.rel (0) target = $region37
  $region36: #{transformer_encoder.10} parent=0 // pred_region
    _
  $region37: #{transformer_encoder.10} parent=0 // pred_fallthru
    _
  // Predicated region
  $region38: #{transformer_encoder.10} parent=0 // pred_check
    _
  $region39: #{transformer_encoder.10} parent=0 // pred_check_branch
    %179 = sbr.rel (0) target = $region41
  $region40: #{transformer_encoder.10} parent=0 // pred_region
    _
  $region41: #{transformer_encoder.10} parent=0 // pred_fallthru
    _

// kernel: transformer_encoder.15
$region0: #{transformer_encoder.15}
  #allocation0 [shape = 'u32[]', space=smem, size = 0x4, offset = 0x4, fixed_abs, tag = 'smem constant byte address 0x4 - core index']
  #allocation1 [shape = 'u32[144,128]{1,0:T(1,128)}', space=vmem, size = 0x12000, scoped, tag = 'internal scratch']
  #allocation2 [shape = 'f32[16,32]{1,0:T(8,128)}', space=vmem, size = 0x2000, scoped, tag = 'scratch operand']
  %s0 = inlined_call_operand.vmem [shape: bf16[16,32], index: 0, kind: input, shape index: {}]
  %s1 = inlined_call_operand.vmem [shape: bf16[32,32], index: 1, kind: input, shape index: {}]
  %s2 = inlined_call_operand.vmem [shape: bf16[1,32], index: 2, kind: input, shape index: {}]
  %s3 = inlined_call_operand.vmem [shape: bf16[32,32], index: 3, kind: input, shape index: {}]
  %s4 = inlined_call_operand.vmem [shape: bf16[1,32], index: 4, kind: input, shape index: {}]
  %s5 = inlined_call_operand.vmem [shape: bf16[1,32], index: 5, kind: input, shape index: {}]
  %s6 = inlined_call_operand.vmem [shape: bf16[1,32], index: 6, kind: input, shape index: {}]
  %s7 = inlined_call_operand.hbm [shape: bf16[16,32], index: 7, kind: output, shape index: {}]
  %s8 = sld [smem:[#allocation0]]
  $region46: #{transformer_encoder.15} parent=0
    _
  %s10 = ssub.s32 1, %s8
  %s11 = scalar_select 0, %s10, %s8
  $region1: #{transformer_encoder.15} parent=0
    #allocation3 [shape = 'u8[4096]{0}', space=vmem, size = 0x1000, scoped, tag = 'output window, operand 0, single buffered']
    #allocation4 [shape = 's32[1]{0}', space=sflag, size = 0x4, scoped, tag = 'scoped memory for transformer_encoder.15']
    %12 = vsyncpa [#allocation4], 0
    // Predicated region
    $region2: #{transformer_encoder.15} parent=1 // pred_check
      _
    $region3: #{transformer_encoder.15} parent=1 // pred_check_branch
      %14 = sbr.rel (0) target = $region5
    $region4: #{transformer_encoder.15} parent=1 // pred_region
      _
    $region5: #{transformer_encoder.15} parent=1 // pred_fallthru
      _
    // Predicated region
    $region6: #{transformer_encoder.15} parent=1 // pred_check
      _
    $region7: #{transformer_encoder.15} parent=1 // pred_check_branch
      %16 = sbr.rel (0) target = $region9
    $region8: #{transformer_encoder.15} parent=1 // pred_region
      _
    $region9: #{transformer_encoder.15} parent=1 // pred_fallthru
      _
    // Predicated region
    $region10: #{transformer_encoder.15} parent=1 // pred_check
      _
    $region11: #{transformer_encoder.15} parent=1 // pred_check_branch
      %18 = sbr.rel (0) target = $region13
    $region12: #{transformer_encoder.15} parent=1 // pred_region
      _
    $region13: #{transformer_encoder.15} parent=1 // pred_fallthru
      _
    // Predicated region
    $region14: #{transformer_encoder.15} parent=1 // pred_check
      _
    $region15: #{transformer_encoder.15} parent=1 // pred_check_branch
      %20 = sbr.rel (0) target = $region17
    $region16: #{transformer_encoder.15} parent=1 // pred_region
      _
    $region17: #{transformer_encoder.15} parent=1 // pred_fallthru
      _
    // Predicated region
    $region18: #{transformer_encoder.15} parent=1 // pred_check
      _
    $region19: #{transformer_encoder.15} parent=1 // pred_check_branch
      %22 = sbr.rel (0) target = $region21
    $region20: #{transformer_encoder.15} parent=1 // pred_region
      _
    $region21: #{transformer_encoder.15} parent=1 // pred_fallthru
      _
    // Predicated region
    $region22: #{transformer_encoder.15} parent=1 // pred_check
      _
    $region23: #{transformer_encoder.15} parent=1 // pred_check_branch
      %24 = sbr.rel (0) target = $region25
    $region24: #{transformer_encoder.15} parent=1 // pred_region
      _
    $region25: #{transformer_encoder.15} parent=1 // pred_fallthru
      _
    // Predicated region
    $region26: #{transformer_encoder.15} parent=1 // pred_check
      _
    $region27: #{transformer_encoder.15} parent=1 // pred_check_branch
      %26 = sbr.rel (0) target = $region29
    $region28: #{transformer_encoder.15} parent=1 // pred_region
      _
    $region29: #{transformer_encoder.15} parent=1 // pred_fallthru
      _
    %v28 = vld [vmem:[%s0] sm:$0xf]
    %v29 = vld [vmem:[%s0 + $0x4] sm:$0xf]
    %p30 = scmp.eq.s32.totalorder 0, 0
    // Predicated region
    $region30: #{transformer_encoder.15} parent=1 // pred_check
      %p31 = pneg %p30
    $region31: #{transformer_encoder.15} parent=1 // pred_check_branch
      %33 = sbr.rel (%p31) target = $region33
    $region32: #{transformer_encoder.15} parent=1 // pred_region
      %v34 = vunpack.c.l.bf16 %v28
      %v35 = vunpack.c.l.bf16 %v29
      %v36 = vld [vmem:[%s4] sm:$0x1]
      %v37 = vunpack.c.l.bf16 %v36
      %v38 = vlaneseq
      %v39 = vshrl.u32 %v38, 7
      %v40 = vsub.s32 0, %v39
      %v41 = vrot.slane %v37, %v40
      %v42 = vadd.f32 %v34, %v41
      %v43 = vadd.f32 %v35, %v41
      %vm44 = vcmask 261120
      %45 = vst.msk [vmem:[#allocation2] sm:$0xff] %vm44, %v42
      %46 = vst.msk [vmem:[#allocation2 + $0x8] sm:$0xff] %vm44, %v43
    $region33: #{transformer_encoder.15} parent=1 // pred_fallthru
      _
    %v47 = vld [vmem:[%s1] sm:$0xf]
    %v48 = vld [vmem:[%s1 + $0x4] sm:$0xf]
    %v49 = vld [vmem:[%s1 + $0x8] sm:$0xf]
    %v50 = vld [vmem:[%s1 + $0xc] sm:$0xf]
    %v51 = vld [vmem:[%s2] sm:$0x1]
    %v52 = vunpack.c.l.bf16 %v51
    %v53 = vlaneseq
    %v54 = vshrl.u32 %v53, 7
    %v55 = vsub.s32 0, %v54
    %v56 = vrot.slane %v52, %v55
    %v59 = vunpack.c.l.b16 %v28
    %v60 = vunpack.c.l.b16 %v29
    %v61 = vpack.c.b16 %v60, %v59
    %v66 = vunpack.c.l.b16 %v47
    %v67 = vunpack.c.l.b16 %v48
    %v68 = vunpack.c.l.b16 %v49
    %v69 = vunpack.c.l.b16 %v50
    %v70 = vpack.c.b16 %v67, %v66
    %v71 = vpack.c.b16 %v69, %v68
    %vm74 = vcmask 261120
    %v76 = vsel %vm74, %v61, 0
    %78 = vmatprep.subr.bf16.mxu0 0
    %79 = vmatpush1.bf16.msra.mxu0 %v70
    %80 = vmatprep.subr.bf16.mxu0 0
    %81 = vmatpush1.bf16.msra.mxu0 %v71
    %82 = vmatprep.subr.bf16.mxu0 0
    %83 = vmatpush1.bf16.msra.mxu0 0
    %84 = vmatprep.subr.bf16.mxu0 0
    %85 = vmatpush1.bf16.msra.mxu0 0
    %86 = vmatprep.subr.bf16.mxu0 0
    %87 = vmatpush1.bf16.msra.mxu0 0
    %88 = vmatprep.subr.bf16.mxu0 0
    %89 = vmatpush1.bf16.msra.mxu0 0
    %90 = vmatprep.subr.bf16.mxu0 0
    %91 = vmatpush1.bf16.msra.mxu0 0
    %92 = vmatprep.subr.bf16.mxu0 0
    %93 = vmatpush1.bf16.msra.mxu0 0
    %94 = vmatprep.subr.bf16.mxu0 0
    %95 = vmatpush1.bf16.msra.mxu0 0
    %96 = vmatprep.subr.bf16.mxu0 0
    %97 = vmatpush1.bf16.msra.mxu0 0
    %98 = vmatprep.subr.bf16.mxu0 0
    %99 = vmatpush1.bf16.msra.mxu0 0
    %100 = vmatprep.subr.bf16.mxu0 0
    %101 = vmatpush1.bf16.msra.mxu0 0
    %102 = vmatprep.subr.bf16.mxu0 0
    %103 = vmatpush1.bf16.msra.mxu0 0
    %104 = vmatprep.subr.bf16.mxu0 0
    %105 = vmatpush1.bf16.msra.mxu0 0
    %106 = vmatprep.subr.bf16.mxu0 0
    %107 = vmatpush1.bf16.msra.mxu0 0
    %108 = vmatprep.subr.bf16.mxu0 0
    %109 = vmatpush1.bf16.msra.mxu0 0
    %110 = vmatprep.mubr.bf16.mxu0 0
    %111 = vmatmul.mubr.bf16.gmra.mrb[0].mxu0 %v76
    %v112 = vpop.f32.mrb[0].mxu0
    %v113 = vadd.f32 %v56, %v112
    %v114 = vpop.f32.mrb[0].mxu0
    %v115 = vpop.f32.mrb[0].mxu0
    %v116 = vadd.f32 %v56, %v115
    %v117 = vpop.f32.mrb[0].mxu0
    %118 = vdwg.mxu0
    %v119 = vmax.f32 %v113, 0.0
    %v120 = vmax.f32 %v116, 0.0
    %v121 = vld [vmem:[#allocation2] sm:$0xff]
    %v122 = vld [vmem:[#allocation2 + $0x8] sm:$0xff]
    %v123 = vpack.c.bf16 %v120, %v119
    %v124 = vld [vmem:[%s3] sm:$0xf]
    %v125 = vld [vmem:[%s3 + $0x4] sm:$0xf]
    %v126 = vld [vmem:[%s3 + $0x8] sm:$0xf]
    %v127 = vld [vmem:[%s3 + $0xc] sm:$0xf]
    %v132 = vunpack.c.l.b16 %v124
    %v133 = vunpack.c.l.b16 %v125
    %v134 = vunpack.c.l.b16 %v126
    %v135 = vunpack.c.l.b16 %v127
    %v136 = vpack.c.b16 %v133, %v132
    %v137 = vpack.c.b16 %v135, %v134
    %v141 = vsel %vm74, %v123, 0
    %143 = vmatprep.subr.bf16.mxu0 0
    %144 = vmatpush1.bf16.msra.mxu0 %v136
    %145 = vmatprep.subr.bf16.mxu0 0
    %146 = vmatpush1.bf16.msra.mxu0 %v137
    %147 = vmatprep.subr.bf16.mxu0 0
    %148 = vmatpush1.bf16.msra.mxu0 0
    %149 = vmatprep.subr.bf16.mxu0 0
    %150 = vmatpush1.bf16.msra.mxu0 0
    %151 = vmatprep.subr.bf16.mxu0 0
    %152 = vmatpush1.bf16.msra.mxu0 0
    %153 = vmatprep.subr.bf16.mxu0 0
    %154 = vmatpush1.bf16.msra.mxu0 0
    %155 = vmatprep.subr.bf16.mxu0 0
    %156 = vmatpush1.bf16.msra.mxu0 0
    %157 = vmatprep.subr.bf16.mxu0 0
    %158 = vmatpush1.bf16.msra.mxu0 0
    %159 = vmatprep.subr.bf16.mxu0 0
    %160 = vmatpush1.bf16.msra.mxu0 0
    %161 = vmatprep.subr.bf16.mxu0 0
    %162 = vmatpush1.bf16.msra.mxu0 0
    %163 = vmatprep.subr.bf16.mxu0 0
    %164 = vmatpush1.bf16.msra.mxu0 0
    %165 = vmatprep.subr.bf16.mxu0 0
    %166 = vmatpush1.bf16.msra.mxu0 0
    %167 = vmatprep.subr.bf16.mxu0 0
    %168 = vmatpush1.bf16.msra.mxu0 0
    %169 = vmatprep.subr.bf16.mxu0 0
    %170 = vmatpush1.bf16.msra.mxu0 0
    %171 = vmatprep.subr.bf16.mxu0 0
    %172 = vmatpush1.bf16.msra.mxu0 0
    %173 = vmatprep.subr.bf16.mxu0 0
    %174 = vmatpush1.bf16.msra.mxu0 0
    %175 = vmatprep.mubr.bf16.mxu0 0
    %176 = vmatmul.mubr.bf16.gmra.mrb[0].mxu0 %v141
    %v177 = vpop.f32.mrb[0].mxu0
    %v178 = vadd.f32 0.0, %v177
    %v179 = vpop.f32.mrb[0].mxu0
    %v180 = vpop.f32.mrb[0].mxu0
    %v181 = vadd.f32 0.0, %v180
    %v182 = vpop.f32.mrb[0].mxu0
    %183 = vdwg.mxu0
    %v184 = vadd.f32 %v121, %v178
    %v185 = vadd.f32 %v122, %v181
    %186 = vst.msk [vmem:[#allocation2] sm:$0xff] %vm74, %v184
    %187 = vst.msk [vmem:[#allocation2 + $0x8] sm:$0xff] %vm74, %v185
    // Predicated region
    $region34: #{transformer_encoder.15} parent=1 // pred_check
      %p188 = pneg %p30
    $region35: #{transformer_encoder.15} parent=1 // pred_check_branch
      %190 = sbr.rel (%p188) target = $region37
    $region36: #{transformer_encoder.15} parent=1 // pred_region
      %v191 = vld [vmem:[#allocation2] sm:$0xff]
      %v192 = vld [vmem:[#allocation2 + $0x8] sm:$0xff]
      %v193 = vsel %vm74, %v191, 0.0
      %194 = vadd.xlane.f32.xlu0 %v193
      %v195 = vpop.xlane.xlu0 %194
      %v196 = vsel %vm74, %v192, 0.0
      %197 = vadd.xlane.f32.xlu0 %v196
      %v198 = vpop.xlane.xlu0 %197
      %v199 = vrcp.pop 32.0
      %v200 = vmul.f32 %v195, %v199
      %v201 = vmul.f32 %v198, %v199
      %v202 = vsub.f32 %v191, %v200
      %v203 = vsub.f32 %v192, %v201
      %v204 = vmul.f32 %v202, %v202
      %v205 = vmul.f32 %v203, %v203
      %v206 = vsel %vm74, %v204, 0.0
      %207 = vadd.xlane.f32.xlu0 %v206
      %v208 = vpop.xlane.xlu0 %207
      %v209 = vsel %vm74, %v205, 0.0
      %210 = vadd.xlane.f32.xlu0 %v209
      %v211 = vpop.xlane.xlu0 %210
      %v212 = vmul.f32 %v208, %v199
      %v213 = vmul.f32 %v211, %v199
      %v214 = vadd.f32 %v212, 1e-05
      %v215 = vadd.f32 %v213, 1e-05
      %v216 = vrsqrt.pop %v214
      %v217 = vrsqrt.pop %v215
      %v218 = vmul.f32 %v202, %v216
      %v219 = vmul.f32 %v203, %v217
      %v220 = vld [vmem:[%s5] sm:$0x1]
      %v221 = vunpack.c.l.bf16 %v220
      %v222 = vlaneseq
      %v223 = vshrl.u32 %v222, 7
      %v224 = vsub.s32 0, %v223
      %v225 = vrot.slane %v221, %v224
      %v226 = vmul.f32 %v218, %v225
      %v227 = vmul.f32 %v219, %v225
      %v228 = vld [vmem:[%s6] sm:$0x1]
      %v229 = vunpack.c.l.bf16 %v228
      %v230 = vlaneseq
      %v231 = vshrl.u32 %v230, 7
      %v232 = vsub.s32 0, %v231
      %v233 = vrot.slane %v229, %v232
      %v234 = vadd.f32 %v226, %v233
      %v235 = vadd.f32 %v227, %v233
      %v236 = vpack.c.bf16 %v235, %v234
      %v238 = vunpack.c.l.b16 %v236
      %v239 = vunpack.c.h.b16 %v236
      %v240 = vpack.c.b16 %v238, %v238
      %v241 = vpack.c.b16 %v239, %v239
      %vm244 = vcmask 257024
      %245 = vst.msk [vmem:[#allocation3] sm:$0xf] %vm244, %v240
      %246 = vst.msk [vmem:[#allocation3 + $0x4] sm:$0xf] %vm244, %v241
    $region37: #{transformer_encoder.15} parent=1 // pred_fallthru
      _
    // Predicated region
    $region38: #{transformer_encoder.15} parent=1 // pred_check
      _
    $region39: #{transformer_encoder.15} parent=1 // pred_check_branch
      %248 = sbr.rel (0) target = $region41
    $region40: #{transformer_encoder.15} parent=1 // pred_region
      %s250 = ssub.s32 128, 128
      %251 = vsyncadd [#allocation4], %s250
      %s252 = sshll.u32 [#allocation3], 4
      %s253 = int_to_ptr.vmem [resolvable:$true] %s252
      %258 = dma.vmem_to_hbm [thread:$0]  %s253, 128, %s7, [#allocation4], 64, 64, 4
    $region41: #{transformer_encoder.15} parent=1 // pred_fallthru
      _
    // Predicated region
    $region42: #{transformer_encoder.15} parent=1 // pred_check
      _
    $region43: #{transformer_encoder.15} parent=1 // pred_check_branch
      %260 = sbr.rel (0) target = $region45
    $region44: #{transformer_encoder.15} parent=1 // pred_region
      %261 = dma.done [#allocation4], 128
    $region45: #{transformer_encoder.15} parent=1 // pred_fallthru
      _
    %262 = vsyncpa [#allocation4], 1

</llo_original>
